<compile_context>
chip_gen: v6e
topology: v6e:2x2x1
jax: 0.10.0
libtpu: 0.0.40
codegen_flags: <defaults>
</compile_context>

<pallas_src>
import functools

import jax
import jax.numpy as jnp
from jax.experimental import pallas as pl
from jax.experimental.pallas import tpu as pltpu


def _gcn_kernel(x_ref, at_ref, w_ref, b_ref, o_ref, *, support_len, order):
    """One (batch, L-tile) block of the fused spatial-GCN forward.

    x_ref : (1, D, Lt)            input tile (lane axis = L, padded to 128)
    at_ref: (S, D, D)             transposed supports, resident; at_ref[s] = A_s^T
    w_ref : (n_blocks, c_out, D)  1x1-conv weight split into concat blocks, resident
    b_ref : (c_out, 1)            1x1-conv bias, resident
    o_ref : (1, c_out, Lt)        output tile
    """
    x = x_ref[0]                                            # (D, Lt)

    # Concat block 0 is x itself -> contributes W0 @ x.
    acc = jnp.dot(w_ref[0], x, preferred_element_type=jnp.float32)   # (c_out, Lt)

    blk = 1
    for s in range(support_len):                            # static unroll (tiny)
        a_t = at_ref[s]                                     # (D, D) = A_s^T
        xk = x
        for _ in range(order):
            # nconv: xk[w, l] = sum_d A_s[d, w] * xk[d, l]  ==  A_s^T @ xk
            xk = jnp.dot(a_t, xk, preferred_element_type=jnp.float32)        # (D, Lt)
            # Fused 1x1-conv contribution of this concat block.
            acc = acc + jnp.dot(w_ref[blk], xk, preferred_element_type=jnp.float32)
            blk += 1

    o_ref[0] = (acc + b_ref[...]).astype(o_ref.dtype)


def gcn_spatialgcn_forward(x, support, w_mlp, b_mlp, *, order=2):
    """Fused Pallas implementation of gcn_spatialGCN.forward (eval mode).

    x       : (N, D, L)   float input
    support : list of (D, D) adjacency matrices
    w_mlp   : (c_out, (order*len(support)+1)*D)  1x1-conv weight
    b_mlp   : (c_out,)                            1x1-conv bias
    returns : (N, c_out, L)
    """
    N, D, L = x.shape
    S = len(support)
    n_blocks = 1 + S * order
    c_out, c_tot = w_mlp.shape
    assert c_tot == n_blocks * D, "mlp in-dim must equal (order*support_len+1)*c_in"
    for a in support:
        assert a.shape == (D, D)

    # Tiny weight-side transforms (free compared to streaming x):
    #   - pre-transpose each support so the kernel only needs plain matmuls,
    #   - split the mlp weight into per-concat-block (c_out, D) slabs.
    a_t = jnp.stack([jnp.transpose(a) for a in support], axis=0).astype(jnp.float32)
    w3 = jnp.transpose(
        w_mlp.reshape(c_out, n_blocks, D), (1, 0, 2)).astype(jnp.float32)
    b2 = b_mlp.reshape(c_out, 1).astype(jnp.float32)

    # Lane-dense layout: pad L (lane axis) to a multiple of 128 -> unmasked vst.
    L_pad = pl.cdiv(L, 128) * 128
    x_in = x if L_pad == L else jnp.pad(x, ((0, 0), (0, 0), (0, L_pad - L)))

    # Largest L tile that divides L_pad (amortizes per-step overhead; blocks stay
    # tiny vs. the scoped VMEM budget on v5e/v6e/v7x).
    if L_pad <= 2048:
        Lt = L_pad
    else:
        Lt = next(t for t in (2048, 1024, 512, 256, 128) if L_pad % t == 0)
    grid = (N, L_pad // Lt)

    flops = 2 * N * L_pad * D * (S * order * D + n_blocks * c_out)
    bytes_accessed = 4 * (N * D * L_pad + N * c_out * L_pad
                          + S * D * D + n_blocks * c_out * D + c_out)

    kernel = functools.partial(_gcn_kernel, support_len=S, order=order)

    out = pl.pallas_call(
        kernel,
        out_shape=jax.ShapeDtypeStruct((N, c_out, L_pad), x.dtype),
        grid_spec=pltpu.PrefetchScalarGridSpec(
            num_scalar_prefetch=0,
            grid=grid,
            in_specs=[
                pl.BlockSpec((1, D, Lt), lambda n, j: (n, 0, j)),            # x tile
                pl.BlockSpec((S, D, D), lambda n, j: (0, 0, 0)),             # A^T, resident
                pl.BlockSpec((n_blocks, c_out, D), lambda n, j: (0, 0, 0)),  # W blocks
                pl.BlockSpec((c_out, 1), lambda n, j: (0, 0)),               # bias
            ],
            out_specs=pl.BlockSpec((1, c_out, Lt), lambda n, j: (n, 0, j)),
        ),
        compiler_params=pltpu.CompilerParams(
            dimension_semantics=("parallel", "parallel"),
        ),
        cost_estimate=pl.CostEstimate(
            flops=flops, transcendentals=0, bytes_accessed=bytes_accessed),
    )(x_in, a_t, w3, b2)

    return out if L_pad == L else out[:, :, :L]


if __name__ == "__main__":
    # Small shapes consistent with the module defaults:
    #   x: (N, c_in, L), support: 3 x (c_in, c_in), mlp: (2*3+1)*c_in -> c_out
    N, c_in, L = 2, 32, 16
    support_len, order, c_out = 3, 2, 32
    c_tot = (order * support_len + 1) * c_in

    key = jax.random.PRNGKey(0)
    k_x, k_a, k_w, k_b = jax.random.split(key, 4)
    x = jax.random.normal(k_x, (N, c_in, L), dtype=jnp.float32)
    a_keys = jax.random.split(k_a, support_len)
    support = [0.1 * jax.random.normal(a_keys[i], (c_in, c_in), dtype=jnp.float32)
               for i in range(support_len)]
    w_mlp = 0.05 * jax.random.normal(k_w, (c_out, c_tot), dtype=jnp.float32)
    b_mlp = jax.random.normal(k_b, (c_out,), dtype=jnp.float32)

    out = gcn_spatialgcn_forward(x, support, w_mlp, b_mlp, order=order)
    out = jax.block_until_ready(out)

    # Pure-JAX reference mirroring the PyTorch forward exactly (eval: dropout = id).
    hp = jax.lax.Precision.HIGHEST
    outs = [x]
    for a in support:
        x1 = jnp.einsum('ndl,dw->nwl', x, a, precision=hp)
        outs.append(x1)
        for _ in range(2, order + 1):
            x2 = jnp.einsum('ndl,dw->nwl', x1, a, precision=hp)
            outs.append(x2)
            x1 = x2
    h = jnp.concatenate(outs, axis=1)                                   # (N, c_tot, L)
    ref = jnp.einsum('oc,ncl->nol', w_mlp, h, precision=hp) + b_mlp[None, :, None]

    assert out.shape == ref.shape == (N, c_out, L)
    max_err = float(jnp.max(jnp.abs(out - ref)))
    assert jnp.allclose(out, ref, atol=1e-3, rtol=1e-3), f"max |err| = {max_err}"

    print("KERNEL_OK")
</pallas_src>

<mosaic_0001>
module attributes {stable_mosaic.version = 11 : i64} {
  func.func @_gcn_kernel(%arg0: i32, %arg1: i32, %arg2: memref<1x32x128xf32, #tpu.memory_space<vmem>>, %arg3: memref<3x32x32xf32, #tpu.memory_space<vmem>>, %arg4: memref<7x32x32xf32, #tpu.memory_space<vmem>>, %arg5: memref<32x1xf32, #tpu.memory_space<vmem>>, %arg6: memref<1x32x128xf32, #tpu.memory_space<vmem>>) attributes {dimension_semantics = [#tpu.dimension_semantics<parallel>, #tpu.dimension_semantics<parallel>], iteration_bounds = array<i64: 2, 1>, scalar_prefetch = 0 : i64, scratch_operands = 0 : i64, tpu.core_type = #tpu.core_type<tc>, window_params = [{transform_indices = @transform_0, window_bounds = array<i64: 1, 32, 128>}, {pipeline_mode = #tpu.pipeline_mode<synchronous>, transform_indices = @transform_1, window_bounds = array<i64: 3, 32, 32>}, {pipeline_mode = #tpu.pipeline_mode<synchronous>, transform_indices = @transform_2, window_bounds = array<i64: 7, 32, 32>}, {pipeline_mode = #tpu.pipeline_mode<synchronous>, transform_indices = @transform_3, window_bounds = array<i64: 32, 1>}, {transform_indices = @transform_4, window_bounds = array<i64: 1, 32, 128>}]} {
    %c0 = arith.constant 0 : index
    %c0_0 = arith.constant 0 : index
    %c0_1 = arith.constant 0 : index
    %0 = vector.load %arg2[%c0, %c0_0, %c0_1] : memref<1x32x128xf32, #tpu.memory_space<vmem>>, vector<1x32x128xf32>
    %1 = vector.shape_cast %0 : vector<1x32x128xf32> to vector<32x128xf32>
    %c0_2 = arith.constant 0 : index
    %c0_3 = arith.constant 0 : index
    %c0_4 = arith.constant 0 : index
    %2 = vector.load %arg4[%c0_2, %c0_3, %c0_4] : memref<7x32x32xf32, #tpu.memory_space<vmem>>, vector<1x32x32xf32>
    %3 = vector.shape_cast %2 : vector<1x32x32xf32> to vector<32x32xf32>
    %cst = arith.constant dense<0.000000e+00> : vector<32x128xf32>
    %4 = tpu.matmul %3, %1, %cst {dimension_numbers = #tpu.dot_dimension_numbers<[1], [0], [0], [1], [0, 0, 1, 1], [], []>} : vector<32x32xf32>, vector<32x128xf32>, vector<32x128xf32> -> vector<32x128xf32>
    %c0_5 = arith.constant 0 : index
    %c0_6 = arith.constant 0 : index
    %c0_7 = arith.constant 0 : index
    %5 = vector.load %arg3[%c0_5, %c0_6, %c0_7] : memref<3x32x32xf32, #tpu.memory_space<vmem>>, vector<1x32x32xf32>
    %6 = vector.shape_cast %5 : vector<1x32x32xf32> to vector<32x32xf32>
    %cst_8 = arith.constant dense<0.000000e+00> : vector<32x128xf32>
    %7 = tpu.matmul %6, %1, %cst_8 {dimension_numbers = #tpu.dot_dimension_numbers<[1], [0], [0], [1], [0, 0, 1, 1], [], []>} : vector<32x32xf32>, vector<32x128xf32>, vector<32x128xf32> -> vector<32x128xf32>
    %c1 = arith.constant 1 : index
    %c0_9 = arith.constant 0 : index
    %c0_10 = arith.constant 0 : index
    %8 = vector.load %arg4[%c1, %c0_9, %c0_10] : memref<7x32x32xf32, #tpu.memory_space<vmem>>, vector<1x32x32xf32>
    %9 = vector.shape_cast %8 : vector<1x32x32xf32> to vector<32x32xf32>
    %cst_11 = arith.constant dense<0.000000e+00> : vector<32x128xf32>
    %10 = tpu.matmul %9, %7, %cst_11 {dimension_numbers = #tpu.dot_dimension_numbers<[1], [0], [0], [1], [0, 0, 1, 1], [], []>} : vector<32x32xf32>, vector<32x128xf32>, vector<32x128xf32> -> vector<32x128xf32>
    %11 = arith.addf %4, %10 : vector<32x128xf32>
    %cst_12 = arith.constant dense<0.000000e+00> : vector<32x128xf32>
    %12 = tpu.matmul %6, %7, %cst_12 {dimension_numbers = #tpu.dot_dimension_numbers<[1], [0], [0], [1], [0, 0, 1, 1], [], []>} : vector<32x32xf32>, vector<32x128xf32>, vector<32x128xf32> -> vector<32x128xf32>
    %c2 = arith.constant 2 : index
    %c0_13 = arith.constant 0 : index
    %c0_14 = arith.constant 0 : index
    %13 = vector.load %arg4[%c2, %c0_13, %c0_14] : memref<7x32x32xf32, #tpu.memory_space<vmem>>, vector<1x32x32xf32>
    %14 = vector.shape_cast %13 : vector<1x32x32xf32> to vector<32x32xf32>
    %cst_15 = arith.constant dense<0.000000e+00> : vector<32x128xf32>
    %15 = tpu.matmul %14, %12, %cst_15 {dimension_numbers = #tpu.dot_dimension_numbers<[1], [0], [0], [1], [0, 0, 1, 1], [], []>} : vector<32x32xf32>, vector<32x128xf32>, vector<32x128xf32> -> vector<32x128xf32>
    %16 = arith.addf %11, %15 : vector<32x128xf32>
    %c1_16 = arith.constant 1 : index
    %c0_17 = arith.constant 0 : index
    %c0_18 = arith.constant 0 : index
    %17 = vector.load %arg3[%c1_16, %c0_17, %c0_18] : memref<3x32x32xf32, #tpu.memory_space<vmem>>, vector<1x32x32xf32>
    %18 = vector.shape_cast %17 : vector<1x32x32xf32> to vector<32x32xf32>
    %cst_19 = arith.constant dense<0.000000e+00> : vector<32x128xf32>
    %19 = tpu.matmul %18, %1, %cst_19 {dimension_numbers = #tpu.dot_dimension_numbers<[1], [0], [0], [1], [0, 0, 1, 1], [], []>} : vector<32x32xf32>, vector<32x128xf32>, vector<32x128xf32> -> vector<32x128xf32>
    %c3 = arith.constant 3 : index
    %c0_20 = arith.constant 0 : index
    %c0_21 = arith.constant 0 : index
    %20 = vector.load %arg4[%c3, %c0_20, %c0_21] : memref<7x32x32xf32, #tpu.memory_space<vmem>>, vector<1x32x32xf32>
    %21 = vector.shape_cast %20 : vector<1x32x32xf32> to vector<32x32xf32>
    %cst_22 = arith.constant dense<0.000000e+00> : vector<32x128xf32>
    %22 = tpu.matmul %21, %19, %cst_22 {dimension_numbers = #tpu.dot_dimension_numbers<[1], [0], [0], [1], [0, 0, 1, 1], [], []>} : vector<32x32xf32>, vector<32x128xf32>, vector<32x128xf32> -> vector<32x128xf32>
    %23 = arith.addf %16, %22 : vector<32x128xf32>
    %cst_23 = arith.constant dense<0.000000e+00> : vector<32x128xf32>
    %24 = tpu.matmul %18, %19, %cst_23 {dimension_numbers = #tpu.dot_dimension_numbers<[1], [0], [0], [1], [0, 0, 1, 1], [], []>} : vector<32x32xf32>, vector<32x128xf32>, vector<32x128xf32> -> vector<32x128xf32>
    %c4 = arith.constant 4 : index
    %c0_24 = arith.constant 0 : index
    %c0_25 = arith.constant 0 : index
    %25 = vector.load %arg4[%c4, %c0_24, %c0_25] : memref<7x32x32xf32, #tpu.memory_space<vmem>>, vector<1x32x32xf32>
    %26 = vector.shape_cast %25 : vector<1x32x32xf32> to vector<32x32xf32>
    %cst_26 = arith.constant dense<0.000000e+00> : vector<32x128xf32>
    %27 = tpu.matmul %26, %24, %cst_26 {dimension_numbers = #tpu.dot_dimension_numbers<[1], [0], [0], [1], [0, 0, 1, 1], [], []>} : vector<32x32xf32>, vector<32x128xf32>, vector<32x128xf32> -> vector<32x128xf32>
    %28 = arith.addf %23, %27 : vector<32x128xf32>
    %c2_27 = arith.constant 2 : index
    %c0_28 = arith.constant 0 : index
    %c0_29 = arith.constant 0 : index
    %29 = vector.load %arg3[%c2_27, %c0_28, %c0_29] : memref<3x32x32xf32, #tpu.memory_space<vmem>>, vector<1x32x32xf32>
    %30 = vector.shape_cast %29 : vector<1x32x32xf32> to vector<32x32xf32>
    %cst_30 = arith.constant dense<0.000000e+00> : vector<32x128xf32>
    %31 = tpu.matmul %30, %1, %cst_30 {dimension_numbers = #tpu.dot_dimension_numbers<[1], [0], [0], [1], [0, 0, 1, 1], [], []>} : vector<32x32xf32>, vector<32x128xf32>, vector<32x128xf32> -> vector<32x128xf32>
    %c5 = arith.constant 5 : index
    %c0_31 = arith.constant 0 : index
    %c0_32 = arith.constant 0 : index
    %32 = vector.load %arg4[%c5, %c0_31, %c0_32] : memref<7x32x32xf32, #tpu.memory_space<vmem>>, vector<1x32x32xf32>
    %33 = vector.shape_cast %32 : vector<1x32x32xf32> to vector<32x32xf32>
    %cst_33 = arith.constant dense<0.000000e+00> : vector<32x128xf32>
    %34 = tpu.matmul %33, %31, %cst_33 {dimension_numbers = #tpu.dot_dimension_numbers<[1], [0], [0], [1], [0, 0, 1, 1], [], []>} : vector<32x32xf32>, vector<32x128xf32>, vector<32x128xf32> -> vector<32x128xf32>
    %35 = arith.addf %28, %34 : vector<32x128xf32>
    %cst_34 = arith.constant dense<0.000000e+00> : vector<32x128xf32>
    %36 = tpu.matmul %30, %31, %cst_34 {dimension_numbers = #tpu.dot_dimension_numbers<[1], [0], [0], [1], [0, 0, 1, 1], [], []>} : vector<32x32xf32>, vector<32x128xf32>, vector<32x128xf32> -> vector<32x128xf32>
    %c6 = arith.constant 6 : index
    %c0_35 = arith.constant 0 : index
    %c0_36 = arith.constant 0 : index
    %37 = vector.load %arg4[%c6, %c0_35, %c0_36] : memref<7x32x32xf32, #tpu.memory_space<vmem>>, vector<1x32x32xf32>
    %38 = vector.shape_cast %37 : vector<1x32x32xf32> to vector<32x32xf32>
    %cst_37 = arith.constant dense<0.000000e+00> : vector<32x128xf32>
    %39 = tpu.matmul %38, %36, %cst_37 {dimension_numbers = #tpu.dot_dimension_numbers<[1], [0], [0], [1], [0, 0, 1, 1], [], []>} : vector<32x32xf32>, vector<32x128xf32>, vector<32x128xf32> -> vector<32x128xf32>
    %40 = arith.addf %35, %39 : vector<32x128xf32>
    %c0_38 = arith.constant 0 : index
    %c0_39 = arith.constant 0 : index
    %41 = vector.load %arg5[%c0_38, %c0_39] : memref<32x1xf32, #tpu.memory_space<vmem>>, vector<32x1xf32>
    %42 = vector.broadcast %41 : vector<32x1xf32> to vector<32x128xf32>
    %43 = arith.addf %40, %42 : vector<32x128xf32>
    %c0_40 = arith.constant 0 : index
    %c0_41 = arith.constant 0 : index
    %c0_42 = arith.constant 0 : index
    %44 = vector.load %arg6[%c0_40, %c0_41, %c0_42] : memref<1x32x128xf32, #tpu.memory_space<vmem>>, vector<1x32x128xf32>
    %45 = vector.shape_cast %44 : vector<1x32x128xf32> to vector<32x128xf32>
    %46 = vector.shape_cast %43 : vector<32x128xf32> to vector<1x32x128xf32>
    tpu.vector_store %arg6[%c0_40, %c0_41, %c0_42], %46 {strides = array<i32>} : memref<1x32x128xf32, #tpu.memory_space<vmem>>, vector<1x32x128xf32>,
    return
  }
  func.func @transform_0(%arg0: i32, %arg1: i32) -> (i32, i32, i32) {
    %c0_i32 = arith.constant 0 : i32
    %c0_i32_0 = arith.constant 0 : i32
    return %arg0, %c0_i32, %arg1 : i32, i32, i32
  }
  func.func @transform_1(%arg0: i32, %arg1: i32) -> (i32, i32, i32) {
    %c0_i32 = arith.constant 0 : i32
    %c0_i32_0 = arith.constant 0 : i32
    %c0_i32_1 = arith.constant 0 : i32
    %c0_i32_2 = arith.constant 0 : i32
    return %c0_i32, %c0_i32_0, %c0_i32_1 : i32, i32, i32
  }
  func.func @transform_2(%arg0: i32, %arg1: i32) -> (i32, i32, i32) {
    %c0_i32 = arith.constant 0 : i32
    %c0_i32_0 = arith.constant 0 : i32
    %c0_i32_1 = arith.constant 0 : i32
    %c0_i32_2 = arith.constant 0 : i32
    return %c0_i32, %c0_i32_0, %c0_i32_1 : i32, i32, i32
  }
  func.func @transform_3(%arg0: i32, %arg1: i32) -> (i32, i32) {
    %c0_i32 = arith.constant 0 : i32
    %c0_i32_0 = arith.constant 0 : i32
    %c0_i32_1 = arith.constant 0 : i32
    return %c0_i32, %c0_i32_0 : i32, i32
  }
  func.func @transform_4(%arg0: i32, %arg1: i32) -> (i32, i32, i32) {
    %c0_i32 = arith.constant 0 : i32
    %c0_i32_0 = arith.constant 0 : i32
    return %arg0, %c0_i32, %arg1 : i32, i32, i32
  }
}

</mosaic_0001>

<llo_original>
// kernel: tpu_custom_call.1
$region0: #{tpu_custom_call.1}
  #allocation0 [shape = 'u32[]', space=smem, size = 0x4, offset = 0x4, fixed_abs, tag = 'smem constant byte address 0x4 - core index']
  #allocation1 [shape = 'u32[144,128]{1,0:T(1,128)}', space=vmem, size = 0x12000, scoped, tag = 'internal scratch']
  %s0 = inlined_call_operand.hbm [shape: f32[2,32,128], index: 0, kind: input, shape index: {}]
  %s1 = inlined_call_operand.hbm [shape: f32[3,32,32], index: 1, kind: input, shape index: {}]
  %s2 = inlined_call_operand.hbm [shape: f32[7,32,32], index: 2, kind: input, shape index: {}]
  %s3 = inlined_call_operand.vmem [shape: f32[32,1], index: 3, kind: input, shape index: {}]
  %s4 = inlined_call_operand.hbm [shape: f32[2,32,128], index: 4, kind: output, shape index: {}]
  %s5 = sld [smem:[#allocation0]]
  $region61: #{tpu_custom_call.1} parent=0
    _
  %s7 = ssub.s32 1, %s5
  %s8 = scalar_select 0, %s7, %s5
  $region1: #{tpu_custom_call.1} parent=0
    #allocation2 [shape = 'u8[32768]{0}', space=vmem, size = 0x8000, scoped, tag = 'input window, operand 0']
    #allocation3 [shape = 's32[2]{0}', space=sflag, size = 0x8, scoped, tag = 'scoped memory for tpu_custom_call.1']
    #allocation4 [shape = 's32[2]{0}', space=sflag, size = 0x8, scoped, tag = 'scoped memory for tpu_custom_call.1']
    #allocation5 [shape = 'u8[49152]{0}', space=vmem, size = 0xc000, scoped, tag = 'input window, operand 1, single buffered']
    #allocation6 [shape = 's32[1]{0}', space=sflag, size = 0x4, scoped, tag = 'scoped memory for tpu_custom_call.1']
    #allocation7 [shape = 'u8[114688]{0}', space=vmem, size = 0x1c000, scoped, tag = 'input window, operand 2, single buffered']
    #allocation8 [shape = 'u8[32768]{0}', space=vmem, size = 0x8000, scoped, tag = 'output window, operand 0']
    %9 = vsyncpa [#allocation3], 0
    %s10 = scalar_lea.sflag [#allocation3], 1
    %11 = vsyncpa %s10, 0
    %12 = vsyncpa [#allocation6], 0
    %13 = vsyncpa [#allocation4], 0
    %s14 = scalar_lea.sflag [#allocation4], 1
    %15 = vsyncpa %s14, 0
    loop: start=0, step=1, limit=4
    $region2: #{tpu_custom_call.1} parent=1 // loop_pre_header
      _
    $region3: #{tpu_custom_call.1} parent=1 // loop_header
      %s17 = sphi 0, %s21
      %p18 = scmp.ge.s32.totalorder %s17, 4
      %s24 = sphi 0, %s36
      %s25 = sphi 0, %s32
      %s26 = sphi 0, %s24
      %s27 = sphi 0, %s25
      %s28 = sphi 0, %s26
      %s29 = sphi 0, %s27
      %s41 = sphi 0, %s43
      %s44 = sphi 0, %s41
      %s45 = sphi 0, %s44
      %s61 = sphi 0, %s45
      %s65 = sphi 0, %s65
      %s67 = sphi 0, %s65
      %s68 = sphi 0, %s67
      %s82 = sphi 0, %s68
      %s86 = sphi 0, %s86
      %s88 = sphi 0, %s86
      %s89 = sphi 0, %s88
      %s103 = sphi 0, %s89
      %s107 = sphi 0, %s107
      %s109 = sphi 0, %s107
      %s110 = sphi 0, %s109
      %s124 = sphi 0, %s110
      %s132 = sphi 0, %s134
      %s135 = sphi 0, %s132
      %s136 = sphi 0, %s135
      %s152 = sphi 0, %s136
    $region4: #{tpu_custom_call.1} parent=1 // loop_header_branch
      %20 = sbr.rel (%p18) target = $region8
    $region5: #{tpu_custom_call.1} parent=1 // loop_body
      %s22 = ssub.s32 %s17, 1
      %s23 = ssub.s32 %s17, 2
      %s30 = sadd.s32 1, %s25
      %p31 = scmp.ge.s32.totalorder %s30, 1
      %s32 = scalar_select %p31, 0, %s30
      %s33 = sadd.s32 1, %s24
      %s34 = scalar_select %p31, %s33, %s24
      %p35 = scmp.ge.s32.totalorder %s34, 2
      %s36 = scalar_select %p35, 0, %s34
      %s37 = ssub.s32 %s24, %s36
      %s38 = ssub.s32 %s25, %s32
      %s39 = sor.u32 %s37, %s38
      %p40 = scmp.eq.s32.totalorder %s39, 0
      %s42 = sadd.s32 %s41, 1
      %s43 = scalar_select %p40, %s41, %s42
      %p46 = pneg %p40
      %p47 = scmp.eq.s32.totalorder %s17, 1
      %p48 = por %p46, %p47
      %p49 = scmp.ne.s32.totalorder %s41, %s44
      %p50 = scmp.eq.s32.totalorder %s17, 0
      %p51 = por %p49, %p50
      %p52 = scmp.ne.s32.totalorder %s41, %s44
      %p53 = scmp.eq.s32.totalorder %s22, 1
      %p54 = por %p52, %p53
      %p55 = scmp.ne.s32.totalorder %s44, %s45
      %p56 = scmp.eq.s32.totalorder %s22, 0
      %p57 = por %p55, %p56
      %p58 = scmp.ne.s32.totalorder %s44, %s45
      %p59 = scmp.eq.s32.totalorder %s23, 1
      %p60 = por %p58, %p59
      %p62 = scmp.ne.s32.totalorder %s45, %s61
      %p63 = scmp.eq.s32.totalorder %s23, 0
      %p64 = por %p62, %p63
      %s66 = sadd.s32 %s65, 1
      %p69 = scmp.eq.s32.totalorder %s17, 1
      %p70 = scmp.ne.s32.totalorder %s65, %s67
      %p71 = scmp.eq.s32.totalorder %s17, 0
      %p72 = por %p70, %p71
      %p73 = scmp.ne.s32.totalorder %s65, %s67
      %p74 = scmp.eq.s32.totalorder %s22, 1
      %p75 = por %p73, %p74
      %p76 = scmp.ne.s32.totalorder %s67, %s68
      %p77 = scmp.eq.s32.totalorder %s22, 0
      %p78 = por %p76, %p77
      %p79 = scmp.ne.s32.totalorder %s67, %s68
      %p80 = scmp.eq.s32.totalorder %s23, 1
      %p81 = por %p79, %p80
      %p83 = scmp.ne.s32.totalorder %s68, %s82
      %p84 = scmp.eq.s32.totalorder %s23, 0
      %p85 = por %p83, %p84
      %s87 = sadd.s32 %s86, 1
      %p90 = scmp.eq.s32.totalorder %s17, 1
      %p91 = scmp.ne.s32.totalorder %s86, %s88
      %p92 = scmp.eq.s32.totalorder %s17, 0
      %p93 = por %p91, %p92
      %p94 = scmp.ne.s32.totalorder %s86, %s88
      %p95 = scmp.eq.s32.totalorder %s22, 1
      %p96 = por %p94, %p95
      %p97 = scmp.ne.s32.totalorder %s88, %s89
      %p98 = scmp.eq.s32.totalorder %s22, 0
      %p99 = por %p97, %p98
      %p100 = scmp.ne.s32.totalorder %s88, %s89
      %p101 = scmp.eq.s32.totalorder %s23, 1
      %p102 = por %p100, %p101
      %p104 = scmp.ne.s32.totalorder %s89, %s103
      %p105 = scmp.eq.s32.totalorder %s23, 0
      %p106 = por %p104, %p105
      %s108 = sadd.s32 %s107, 1
      %p111 = scmp.eq.s32.totalorder %s17, 1
      %p112 = scmp.ne.s32.totalorder %s107, %s109
      %p113 = scmp.eq.s32.totalorder %s17, 0
      %p114 = por %p112, %p113
      %p115 = scmp.ne.s32.totalorder %s107, %s109
      %p116 = scmp.eq.s32.totalorder %s22, 1
      %p117 = por %p115, %p116
      %p118 = scmp.ne.s32.totalorder %s109, %s110
      %p119 = scmp.eq.s32.totalorder %s22, 0
      %p120 = por %p118, %p119
      %p121 = scmp.ne.s32.totalorder %s109, %s110
      %p122 = scmp.eq.s32.totalorder %s23, 1
      %p123 = por %p121, %p122
      %p125 = scmp.ne.s32.totalorder %s110, %s124
      %p126 = scmp.eq.s32.totalorder %s23, 0
      %p127 = por %p125, %p126
      %s128 = ssub.s32 %s24, %s36
      %s129 = ssub.s32 %s25, %s32
      %s130 = sor.u32 %s128, %s129
      %p131 = scmp.eq.s32.totalorder %s130, 0
      %s133 = sadd.s32 %s132, 1
      %s134 = scalar_select %p131, %s132, %s133
      %p137 = pneg %p131
      %p138 = scmp.eq.s32.totalorder %s17, 1
      %p139 = por %p137, %p138
      %p140 = scmp.ne.s32.totalorder %s132, %s135
      %p141 = scmp.eq.s32.totalorder %s17, 0
      %p142 = por %p140, %p141
      %p143 = scmp.ne.s32.totalorder %s132, %s135
      %p144 = scmp.eq.s32.totalorder %s22, 1
      %p145 = por %p143, %p144
      %p146 = scmp.ne.s32.totalorder %s135, %s136
      %p147 = scmp.eq.s32.totalorder %s22, 0
      %p148 = por %p146, %p147
      %p149 = scmp.ne.s32.totalorder %s135, %s136
      %p150 = scmp.eq.s32.totalorder %s23, 1
      %p151 = por %p149, %p150
      %p153 = scmp.ne.s32.totalorder %s136, %s152
      %p154 = scmp.eq.s32.totalorder %s23, 0
      %p155 = por %p153, %p154
      %p156 = scmp.le.s32.totalorder 1, %s17
      %p157 = scmp.lt.s32.totalorder %s17, 3
      %p158 = pnand %p156, %p157
      %p159 = pneg %p158
      // Predicated region
      $region9: #{tpu_custom_call.1} parent=5 // pred_check
        _
      $region10: #{tpu_custom_call.1} parent=5 // pred_check_branch
        %161 = sbr.rel (%p158) target = $region12
      $region11: #{tpu_custom_call.1} parent=5 // pred_region
        %s162 = ssub.s32 %s17, 1
        // Predicated region
        $region13: #{tpu_custom_call.1} parent=11 // pred_check
          %p163 = pneg %p78
        $region14: #{tpu_custom_call.1} parent=11 // pred_check_branch
          %165 = sbr.rel (%p163) target = $region16
        $region15: #{tpu_custom_call.1} parent=11 // pred_region
          %s167 = ssub.s32 1536, 1536
          %168 = vsyncadd [#allocation6], %s167
          %s169 = sshll.u32 [#allocation5], 4
          %s170 = int_to_ptr.vmem [resolvable:$true] %s169
          %175 = dma.hbm_to_vmem [thread:$0]  %s1, 1536, %s170, [#allocation6], 128, 128, 8
        $region16: #{tpu_custom_call.1} parent=11 // pred_fallthru
          _
        // Predicated region
        $region17: #{tpu_custom_call.1} parent=11 // pred_check
          %p176 = pneg %p99
        $region18: #{tpu_custom_call.1} parent=11 // pred_check_branch
          %178 = sbr.rel (%p176) target = $region20
        $region19: #{tpu_custom_call.1} parent=11 // pred_region
          %s180 = ssub.s32 3584, 3584
          %181 = vsyncadd [#allocation6], %s180
          %s182 = sshll.u32 [#allocation7], 4
          %s183 = int_to_ptr.vmem [resolvable:$true] %s182
          %188 = dma.hbm_to_vmem [thread:$0]  %s2, 3584, %s183, [#allocation6], 128, 128, 8
        $region20: #{tpu_custom_call.1} parent=11 // pred_fallthru
          _
        // Predicated region
        $region21: #{tpu_custom_call.1} parent=11 // pred_check
          %p189 = pneg %p120
        $region22: #{tpu_custom_call.1} parent=11 // pred_check_branch
          %191 = sbr.rel (%p189) target = $region24
        $region23: #{tpu_custom_call.1} parent=11 // pred_region
          _
        $region24: #{tpu_custom_call.1} parent=11 // pred_fallthru
          _
      $region12: #{tpu_custom_call.1} parent=5 // pred_fallthru
        _
      %p192 = scmp.lt.s32.totalorder %s17, 2
      // Predicated region
      $region25: #{tpu_custom_call.1} parent=5 // pred_check
        %p193 = pneg %p192
      $region26: #{tpu_custom_call.1} parent=5 // pred_check_branch
        %195 = sbr.rel (%p193) target = $region28
      $region27: #{tpu_custom_call.1} parent=5 // pred_region
        // Predicated region
        $region29: #{tpu_custom_call.1} parent=27 // pred_check
          %p196 = pneg %p51
        $region30: #{tpu_custom_call.1} parent=27 // pred_check_branch
          %198 = sbr.rel (%p196) target = $region32
        $region31: #{tpu_custom_call.1} parent=27 // pred_region
          %s199 = sand.u32 %s41, 1
          %s200 = scalar_lea.sflag [#allocation3], %s199
          %s201 = sand.u32 %s41, 1
          %s202 = smul.addr %s201, 32
          %s203 = scalar_lea.vmem [#allocation2], %s202
          %s205 = ssub.s32 512, 512
          %206 = vsyncadd %s200, %s205
          %s207 = smul.addr %s24, 4
          %s208 = sadd.s32 %s25, %s207
          %s209 = smul.addr %s208, 128
          %s210 = scalar_lea.hbm %s0, %s209
          %s211 = sshll.u32 %s203, 4
          %s212 = int_to_ptr.vmem [resolvable:$true] %s211
          %217 = dma.hbm_to_vmem [thread:$0]  %s210, 512, %s212, %s200, 128, 128, 8
        $region32: #{tpu_custom_call.1} parent=27 // pred_fallthru
          _
      $region28: #{tpu_custom_call.1} parent=5 // pred_fallthru
        _
      %p218 = scmp.le.s32.totalorder 1, %s17
      %p219 = scmp.lt.s32.totalorder %s17, 3
      %p220 = pnand %p218, %p219
      %p221 = pneg %p220
      // Predicated region
      $region33: #{tpu_custom_call.1} parent=5 // pred_check
        _
      $region34: #{tpu_custom_call.1} parent=5 // pred_check_branch
        %223 = sbr.rel (%p220) target = $region36
      $region35: #{tpu_custom_call.1} parent=5 // pred_region
        %s224 = ssub.s32 %s17, 1
        %s225 = sand.u32 %s44, 1
        %s226 = scalar_lea.sflag [#allocation3], %s225
        %s227 = sand.u32 %s44, 1
        %s228 = smul.addr %s227, 32
        %s229 = scalar_lea.vmem [#allocation2], %s228
        // Predicated region
        $region37: #{tpu_custom_call.1} parent=35 // pred_check
          %p230 = pneg %p57
        $region38: #{tpu_custom_call.1} parent=35 // pred_check_branch
          %232 = sbr.rel (%p230) target = $region40
        $region39: #{tpu_custom_call.1} parent=35 // pred_region
          %233 = dma.done %s226, 512
        $region40: #{tpu_custom_call.1} parent=35 // pred_fallthru
          _
        // Predicated region
        $region41: #{tpu_custom_call.1} parent=35 // pred_check
          %p234 = pneg %p78
        $region42: #{tpu_custom_call.1} parent=35 // pred_check_branch
          %236 = sbr.rel (%p234) target = $region44
        $region43: #{tpu_custom_call.1} parent=35 // pred_region
          %237 = dma.done [#allocation6], 1536
        $region44: #{tpu_custom_call.1} parent=35 // pred_fallthru
          _
        // Predicated region
        $region45: #{tpu_custom_call.1} parent=35 // pred_check
          %p238 = pneg %p99
        $region46: #{tpu_custom_call.1} parent=35 // pred_check_branch
          %240 = sbr.rel (%p238) target = $region48
        $region47: #{tpu_custom_call.1} parent=35 // pred_region
          %241 = dma.done [#allocation6], 3584
        $region48: #{tpu_custom_call.1} parent=35 // pred_fallthru
          _
        %s242 = sand.u32 %s44, 1
        %s243 = scalar_lea.sflag [#allocation3], %s242
        %s244 = sand.u32 %s44, 1
        %s245 = smul.addr %s244, 32
        %s246 = scalar_lea.vmem [#allocation2], %s245
        %p247 = pneg %p57
        %p248 = pneg %p54
        %p249 = pneg %p78
        %p250 = pneg %p75
        %p251 = pneg %p99
        %p252 = pneg %p96
        %p253 = pneg %p120
        %p254 = pneg %p117
        %p255 = pneg %p148
        %p256 = pneg %p145
        %s257 = sand.u32 %s135, 1
        %s258 = scalar_lea.sflag [#allocation4], %s257
        %s259 = sand.u32 %s135, 1
        %s260 = smul.addr %s259, 32
        %s261 = scalar_lea.vmem [#allocation8], %s260
        %v262 = vld [vmem:[%s229] sm:$0xff]
        %v263 = vld [vmem:[%s229 + $0x8] sm:$0xff]
        %v264 = vld [vmem:[%s229 + $0x10] sm:$0xff]
        %v265 = vld [vmem:[%s229 + $0x18] sm:$0xff]
        %v266 = vld [vmem:[#allocation7] sm:$0xff]
        %v267 = vld [vmem:[#allocation7 + $0x8] sm:$0xff]
        %v268 = vld [vmem:[#allocation7 + $0x10] sm:$0xff]
        %v269 = vld [vmem:[#allocation7 + $0x18] sm:$0xff]
        %v270 = vld [vmem:[#allocation5] sm:$0xff]
        %v271 = vld [vmem:[#allocation5 + $0x8] sm:$0xff]
        %v272 = vld [vmem:[#allocation5 + $0x10] sm:$0xff]
        %v273 = vld [vmem:[#allocation5 + $0x18] sm:$0xff]
        %vm274 = vcmask 261120
        %v276 = vsel %vm274, %v270, 0
        %v279 = vsel %vm274, %v271, 0
        %v282 = vsel %vm274, %v272, 0
        %v285 = vsel %vm274, %v273, 0
        %287 = vmatprep.subr.mxu0 0.0
        %288 = vmatpush1.msra.mxu0 0.0
        %289 = vmatprep.subr.mxu0 0.0
        %290 = vmatpush1.msra.mxu0 0.0
        %291 = vmatprep.subr.mxu0 0.0
        %292 = vmatpush1.msra.mxu0 0.0
        %293 = vmatprep.subr.mxu0 0.0
        %294 = vmatpush1.msra.mxu0 0.0
        %295 = vmatprep.subr.mxu0 0.0
        %296 = vmatpush1.msra.mxu0 0.0
        %297 = vmatprep.subr.mxu0 0.0
        %298 = vmatpush1.msra.mxu0 0.0
        %299 = vmatprep.subr.mxu0 0.0
        %300 = vmatpush1.msra.mxu0 0.0
        %301 = vmatprep.subr.mxu0 0.0
        %302 = vmatpush1.msra.mxu0 0.0
        %303 = vmatprep.subr.mxu0 0.0
        %304 = vmatpush1.msra.mxu0 0.0
        %305 = vmatprep.subr.mxu0 0.0
        %306 = vmatpush1.msra.mxu0 0.0
        %307 = vmatprep.subr.mxu0 0.0
        %308 = vmatpush1.msra.mxu0 0.0
        %309 = vmatprep.subr.mxu0 0.0
        %310 = vmatpush1.msra.mxu0 0.0
        %311 = vmatprep.subr.mxu0 0.0
        %312 = vmatpush1.msra.mxu0 %v265
        %313 = vmatprep.subr.mxu0 0.0
        %314 = vmatpush1.msra.mxu0 %v264
        %315 = vmatprep.subr.mxu0 0.0
        %316 = vmatpush1.msra.mxu0 %v263
        %317 = vmatprep.subr.mxu0 0.0
        %318 = vmatpush1.msra.mxu0 %v262
        %319 = vmatprep.subr.mxu0 0.0
        %320 = vmatpush2.msra.mxu0 0.0
        %321 = vmatprep.subr.mxu0 0.0
        %322 = vmatpush2.msra.mxu0 0.0
        %323 = vmatprep.subr.mxu0 0.0
        %324 = vmatpush2.msra.mxu0 0.0
        %325 = vmatprep.subr.mxu0 0.0
        %326 = vmatpush2.msra.mxu0 0.0
        %327 = vmatprep.subr.mxu0 0.0
        %328 = vmatpush2.msra.mxu0 0.0
        %329 = vmatprep.subr.mxu0 0.0
        %330 = vmatpush2.msra.mxu0 0.0
        %331 = vmatprep.subr.mxu0 0.0
        %332 = vmatpush2.msra.mxu0 0.0
        %333 = vmatprep.subr.mxu0 0.0
        %334 = vmatpush2.msra.mxu0 0.0
        %335 = vmatprep.subr.mxu0 0.0
        %336 = vmatpush2.msra.mxu0 0.0
        %337 = vmatprep.subr.mxu0 0.0
        %338 = vmatpush2.msra.mxu0 0.0
        %339 = vmatprep.subr.mxu0 0.0
        %340 = vmatpush2.msra.mxu0 0.0
        %341 = vmatprep.subr.mxu0 0.0
        %342 = vmatpush2.msra.mxu0 0.0
        %343 = vmatprep.subr.mxu0 0.0
        %344 = vmatpush2.msra.mxu0 0.0
        %345 = vmatprep.subr.mxu0 0.0
        %346 = vmatpush2.msra.mxu0 0.0
        %347 = vmatprep.subr.mxu0 0.0
        %348 = vmatpush2.msra.mxu0 0.0
        %349 = vmatprep.subr.mxu0 0.0
        %350 = vmatpush2.msra.mxu0 0.0
        %351 = vmatprep.mubr.f32.mxu0 0.0
        %352 = vmatmul.mubr.f32.gmra.mxu0 %v276
        %v353 = vpop.f32.mrf.mxu0
        %v354 = vadd.f32 0.0, %v353
        %v355 = vpop.f32.mrf.mxu0
        %356 = vmatprep.mubr.f32.mxu0 0.0
        %357 = vmatmul.mubr.f32.gmra.mxu0 %v279
        %v358 = vpop.f32.mrf.mxu0
        %v359 = vadd.f32 0.0, %v358
        %v360 = vpop.f32.mrf.mxu0
        %361 = vmatprep.mubr.f32.mxu0 0.0
        %362 = vmatmul.mubr.f32.gmra.mxu0 %v282
        %v363 = vpop.f32.mrf.mxu0
        %v364 = vadd.f32 0.0, %v363
        %v365 = vpop.f32.mrf.mxu0
        %366 = vmatprep.mubr.f32.mxu0 0.0
        %367 = vmatmul.mubr.f32.gmra.mxu0 %v285
        %v368 = vpop.f32.mrf.mxu0
        %v369 = vadd.f32 0.0, %v368
        %v370 = vpop.f32.mrf.mxu0
        %371 = vdwg.mxu0
        %s372 = scalar_lea.vmem [#allocation7], 32
        %v373 = vld [vmem:[%s372] sm:$0xff]
        %v374 = vld [vmem:[%s372 + $0x8] sm:$0xff]
        %v375 = vld [vmem:[%s372 + $0x10] sm:$0xff]
        %v376 = vld [vmem:[%s372 + $0x18] sm:$0xff]
        %v378 = vsel %vm274, %v373, 0
        %v381 = vsel %vm274, %v374, 0
        %v384 = vsel %vm274, %v375, 0
        %v387 = vsel %vm274, %v376, 0
        %389 = vmatprep.subr.mxu0 0.0
        %390 = vmatpush1.msra.mxu0 0.0
        %391 = vmatprep.subr.mxu0 0.0
        %392 = vmatpush1.msra.mxu0 0.0
        %393 = vmatprep.subr.mxu0 0.0
        %394 = vmatpush1.msra.mxu0 0.0
        %395 = vmatprep.subr.mxu0 0.0
        %396 = vmatpush1.msra.mxu0 0.0
        %397 = vmatprep.subr.mxu0 0.0
        %398 = vmatpush1.msra.mxu0 0.0
        %399 = vmatprep.subr.mxu0 0.0
        %400 = vmatpush1.msra.mxu0 0.0
        %401 = vmatprep.subr.mxu0 0.0
        %402 = vmatpush1.msra.mxu0 0.0
        %403 = vmatprep.subr.mxu0 0.0
        %404 = vmatpush1.msra.mxu0 0.0
        %405 = vmatprep.subr.mxu0 0.0
        %406 = vmatpush1.msra.mxu0 0.0
        %407 = vmatprep.subr.mxu0 0.0
        %408 = vmatpush1.msra.mxu0 0.0
        %409 = vmatprep.subr.mxu0 0.0
        %410 = vmatpush1.msra.mxu0 0.0
        %411 = vmatprep.subr.mxu0 0.0
        %412 = vmatpush1.msra.mxu0 0.0
        %413 = vmatprep.subr.mxu0 0.0
        %414 = vmatpush1.msra.mxu0 %v369
        %415 = vmatprep.subr.mxu0 0.0
        %416 = vmatpush1.msra.mxu0 %v364
        %417 = vmatprep.subr.mxu0 0.0
        %418 = vmatpush1.msra.mxu0 %v359
        %419 = vmatprep.subr.mxu0 0.0
        %420 = vmatpush1.msra.mxu0 %v354
        %421 = vmatprep.subr.mxu0 0.0
        %422 = vmatpush2.msra.mxu0 0.0
        %423 = vmatprep.subr.mxu0 0.0
        %424 = vmatpush2.msra.mxu0 0.0
        %425 = vmatprep.subr.mxu0 0.0
        %426 = vmatpush2.msra.mxu0 0.0
        %427 = vmatprep.subr.mxu0 0.0
        %428 = vmatpush2.msra.mxu0 0.0
        %429 = vmatprep.subr.mxu0 0.0
        %430 = vmatpush2.msra.mxu0 0.0
        %431 = vmatprep.subr.mxu0 0.0
        %432 = vmatpush2.msra.mxu0 0.0
        %433 = vmatprep.subr.mxu0 0.0
        %434 = vmatpush2.msra.mxu0 0.0
        %435 = vmatprep.subr.mxu0 0.0
        %436 = vmatpush2.msra.mxu0 0.0
        %437 = vmatprep.subr.mxu0 0.0
        %438 = vmatpush2.msra.mxu0 0.0
        %439 = vmatprep.subr.mxu0 0.0
        %440 = vmatpush2.msra.mxu0 0.0
        %441 = vmatprep.subr.mxu0 0.0
        %442 = vmatpush2.msra.mxu0 0.0
        %443 = vmatprep.subr.mxu0 0.0
        %444 = vmatpush2.msra.mxu0 0.0
        %445 = vmatprep.subr.mxu0 0.0
        %446 = vmatpush2.msra.mxu0 0.0
        %447 = vmatprep.subr.mxu0 0.0
        %448 = vmatpush2.msra.mxu0 0.0
        %449 = vmatprep.subr.mxu0 0.0
        %450 = vmatpush2.msra.mxu0 0.0
        %451 = vmatprep.subr.mxu0 0.0
        %452 = vmatpush2.msra.mxu0 0.0
        %453 = vmatprep.mubr.f32.mxu0 0.0
        %454 = vmatmul.mubr.f32.gmra.mxu0 %v378
        %v455 = vpop.f32.mrf.mxu0
        %v456 = vadd.f32 0.0, %v455
        %v457 = vpop.f32.mrf.mxu0
        %458 = vmatprep.mubr.f32.mxu0 0.0
        %459 = vmatmul.mubr.f32.gmra.mxu0 %v381
        %v460 = vpop.f32.mrf.mxu0
        %v461 = vadd.f32 0.0, %v460
        %v462 = vpop.f32.mrf.mxu0
        %463 = vmatprep.mubr.f32.mxu0 0.0
        %464 = vmatmul.mubr.f32.gmra.mxu0 %v384
        %v465 = vpop.f32.mrf.mxu0
        %v466 = vadd.f32 0.0, %v465
        %v467 = vpop.f32.mrf.mxu0
        %468 = vmatprep.mubr.f32.mxu0 0.0
        %469 = vmatmul.mubr.f32.gmra.mxu0 %v387
        %v470 = vpop.f32.mrf.mxu0
        %v471 = vadd.f32 0.0, %v470
        %v472 = vpop.f32.mrf.mxu0
        %473 = vdwg.mxu0
        %v475 = vsel %vm274, %v266, 0
        %v478 = vsel %vm274, %v267, 0
        %v481 = vsel %vm274, %v268, 0
        %v484 = vsel %vm274, %v269, 0
        %486 = vmatprep.subr.mxu0 0.0
        %487 = vmatpush1.msra.mxu0 0.0
        %488 = vmatprep.subr.mxu0 0.0
        %489 = vmatpush1.msra.mxu0 0.0
        %490 = vmatprep.subr.mxu0 0.0
        %491 = vmatpush1.msra.mxu0 0.0
        %492 = vmatprep.subr.mxu0 0.0
        %493 = vmatpush1.msra.mxu0 0.0
        %494 = vmatprep.subr.mxu0 0.0
        %495 = vmatpush1.msra.mxu0 0.0
        %496 = vmatprep.subr.mxu0 0.0
        %497 = vmatpush1.msra.mxu0 0.0
        %498 = vmatprep.subr.mxu0 0.0
        %499 = vmatpush1.msra.mxu0 0.0
        %500 = vmatprep.subr.mxu0 0.0
        %501 = vmatpush1.msra.mxu0 0.0
        %502 = vmatprep.subr.mxu0 0.0
        %503 = vmatpush1.msra.mxu0 0.0
        %504 = vmatprep.subr.mxu0 0.0
        %505 = vmatpush1.msra.mxu0 0.0
        %506 = vmatprep.subr.mxu0 0.0
        %507 = vmatpush1.msra.mxu0 0.0
        %508 = vmatprep.subr.mxu0 0.0
        %509 = vmatpush1.msra.mxu0 0.0
        %510 = vmatprep.subr.mxu0 0.0
        %511 = vmatpush1.msra.mxu0 %v265
        %512 = vmatprep.subr.mxu0 0.0
        %513 = vmatpush1.msra.mxu0 %v264
        %514 = vmatprep.subr.mxu0 0.0
        %515 = vmatpush1.msra.mxu0 %v263
        %516 = vmatprep.subr.mxu0 0.0
        %517 = vmatpush1.msra.mxu0 %v262
        %518 = vmatprep.subr.mxu0 0.0
        %519 = vmatpush2.msra.mxu0 0.0
        %520 = vmatprep.subr.mxu0 0.0
        %521 = vmatpush2.msra.mxu0 0.0
        %522 = vmatprep.subr.mxu0 0.0
        %523 = vmatpush2.msra.mxu0 0.0
        %524 = vmatprep.subr.mxu0 0.0
        %525 = vmatpush2.msra.mxu0 0.0
        %526 = vmatprep.subr.mxu0 0.0
        %527 = vmatpush2.msra.mxu0 0.0
        %528 = vmatprep.subr.mxu0 0.0
        %529 = vmatpush2.msra.mxu0 0.0
        %530 = vmatprep.subr.mxu0 0.0
        %531 = vmatpush2.msra.mxu0 0.0
        %532 = vmatprep.subr.mxu0 0.0
        %533 = vmatpush2.msra.mxu0 0.0
        %534 = vmatprep.subr.mxu0 0.0
        %535 = vmatpush2.msra.mxu0 0.0
        %536 = vmatprep.subr.mxu0 0.0
        %537 = vmatpush2.msra.mxu0 0.0
        %538 = vmatprep.subr.mxu0 0.0
        %539 = vmatpush2.msra.mxu0 0.0
        %540 = vmatprep.subr.mxu0 0.0
        %541 = vmatpush2.msra.mxu0 0.0
        %542 = vmatprep.subr.mxu0 0.0
        %543 = vmatpush2.msra.mxu0 0.0
        %544 = vmatprep.subr.mxu0 0.0
        %545 = vmatpush2.msra.mxu0 0.0
        %546 = vmatprep.subr.mxu0 0.0
        %547 = vmatpush2.msra.mxu0 0.0
        %548 = vmatprep.subr.mxu0 0.0
        %549 = vmatpush2.msra.mxu0 0.0
        %550 = vmatprep.mubr.f32.mxu0 0.0
        %551 = vmatmul.mubr.f32.gmra.mxu0 %v475
        %v552 = vpop.f32.mrf.mxu0
        %v553 = vadd.f32 %v456, %v552
        %v554 = vpop.f32.mrf.mxu0
        %555 = vmatprep.mubr.f32.mxu0 0.0
        %556 = vmatmul.mubr.f32.gmra.mxu0 %v478
        %v557 = vpop.f32.mrf.mxu0
        %v558 = vadd.f32 %v461, %v557
        %v559 = vpop.f32.mrf.mxu0
        %560 = vmatprep.mubr.f32.mxu0 0.0
        %561 = vmatmul.mubr.f32.gmra.mxu0 %v481
        %v562 = vpop.f32.mrf.mxu0
        %v563 = vadd.f32 %v466, %v562
        %v564 = vpop.f32.mrf.mxu0
        %565 = vmatprep.mubr.f32.mxu0 0.0
        %566 = vmatmul.mubr.f32.gmra.mxu0 %v484
        %v567 = vpop.f32.mrf.mxu0
        %v568 = vadd.f32 %v471, %v567
        %v569 = vpop.f32.mrf.mxu0
        %570 = vdwg.mxu0
        %571 = vmatprep.subr.mxu0 0.0
        %572 = vmatpush1.msra.mxu0 0.0
        %573 = vmatprep.subr.mxu0 0.0
        %574 = vmatpush1.msra.mxu0 0.0
        %575 = vmatprep.subr.mxu0 0.0
        %576 = vmatpush1.msra.mxu0 0.0
        %577 = vmatprep.subr.mxu0 0.0
        %578 = vmatpush1.msra.mxu0 0.0
        %579 = vmatprep.subr.mxu0 0.0
        %580 = vmatpush1.msra.mxu0 0.0
        %581 = vmatprep.subr.mxu0 0.0
        %582 = vmatpush1.msra.mxu0 0.0
        %583 = vmatprep.subr.mxu0 0.0
        %584 = vmatpush1.msra.mxu0 0.0
        %585 = vmatprep.subr.mxu0 0.0
        %586 = vmatpush1.msra.mxu0 0.0
        %587 = vmatprep.subr.mxu0 0.0
        %588 = vmatpush1.msra.mxu0 0.0
        %589 = vmatprep.subr.mxu0 0.0
        %590 = vmatpush1.msra.mxu0 0.0
        %591 = vmatprep.subr.mxu0 0.0
        %592 = vmatpush1.msra.mxu0 0.0
        %593 = vmatprep.subr.mxu0 0.0
        %594 = vmatpush1.msra.mxu0 0.0
        %595 = vmatprep.subr.mxu0 0.0
        %596 = vmatpush1.msra.mxu0 %v369
        %597 = vmatprep.subr.mxu0 0.0
        %598 = vmatpush1.msra.mxu0 %v364
        %599 = vmatprep.subr.mxu0 0.0
        %600 = vmatpush1.msra.mxu0 %v359
        %601 = vmatprep.subr.mxu0 0.0
        %602 = vmatpush1.msra.mxu0 %v354
        %603 = vmatprep.subr.mxu0 0.0
        %604 = vmatpush2.msra.mxu0 0.0
        %605 = vmatprep.subr.mxu0 0.0
        %606 = vmatpush2.msra.mxu0 0.0
        %607 = vmatprep.subr.mxu0 0.0
        %608 = vmatpush2.msra.mxu0 0.0
        %609 = vmatprep.subr.mxu0 0.0
        %610 = vmatpush2.msra.mxu0 0.0
        %611 = vmatprep.subr.mxu0 0.0
        %612 = vmatpush2.msra.mxu0 0.0
        %613 = vmatprep.subr.mxu0 0.0
        %614 = vmatpush2.msra.mxu0 0.0
        %615 = vmatprep.subr.mxu0 0.0
        %616 = vmatpush2.msra.mxu0 0.0
        %617 = vmatprep.subr.mxu0 0.0
        %618 = vmatpush2.msra.mxu0 0.0
        %619 = vmatprep.subr.mxu0 0.0
        %620 = vmatpush2.msra.mxu0 0.0
        %621 = vmatprep.subr.mxu0 0.0
        %622 = vmatpush2.msra.mxu0 0.0
        %623 = vmatprep.subr.mxu0 0.0
        %624 = vmatpush2.msra.mxu0 0.0
        %625 = vmatprep.subr.mxu0 0.0
        %626 = vmatpush2.msra.mxu0 0.0
        %627 = vmatprep.subr.mxu0 0.0
        %628 = vmatpush2.msra.mxu0 0.0
        %629 = vmatprep.subr.mxu0 0.0
        %630 = vmatpush2.msra.mxu0 0.0
        %631 = vmatprep.subr.mxu0 0.0
        %632 = vmatpush2.msra.mxu0 0.0
        %633 = vmatprep.subr.mxu0 0.0
        %634 = vmatpush2.msra.mxu0 0.0
        %635 = vmatprep.mubr.f32.mxu0 0.0
        %636 = vmatmul.mubr.f32.gmra.mxu0 %v276
        %v637 = vpop.f32.mrf.mxu0
        %v638 = vadd.f32 0.0, %v637
        %v639 = vpop.f32.mrf.mxu0
        %640 = vmatprep.mubr.f32.mxu0 0.0
        %641 = vmatmul.mubr.f32.gmra.mxu0 %v279
        %v642 = vpop.f32.mrf.mxu0
        %v643 = vadd.f32 0.0, %v642
        %v644 = vpop.f32.mrf.mxu0
        %645 = vmatprep.mubr.f32.mxu0 0.0
        %646 = vmatmul.mubr.f32.gmra.mxu0 %v282
        %v647 = vpop.f32.mrf.mxu0
        %v648 = vadd.f32 0.0, %v647
        %v649 = vpop.f32.mrf.mxu0
        %650 = vmatprep.mubr.f32.mxu0 0.0
        %651 = vmatmul.mubr.f32.gmra.mxu0 %v285
        %v652 = vpop.f32.mrf.mxu0
        %v653 = vadd.f32 0.0, %v652
        %v654 = vpop.f32.mrf.mxu0
        %655 = vdwg.mxu0
        %s656 = scalar_lea.vmem [#allocation7], 64
        %v657 = vld [vmem:[%s656] sm:$0xff]
        %v658 = vld [vmem:[%s656 + $0x8] sm:$0xff]
        %v659 = vld [vmem:[%s656 + $0x10] sm:$0xff]
        %v660 = vld [vmem:[%s656 + $0x18] sm:$0xff]
        %v662 = vsel %vm274, %v657, 0
        %v665 = vsel %vm274, %v658, 0
        %v668 = vsel %vm274, %v659, 0
        %v671 = vsel %vm274, %v660, 0
        %673 = vmatprep.subr.mxu0 0.0
        %674 = vmatpush1.msra.mxu0 0.0
        %675 = vmatprep.subr.mxu0 0.0
        %676 = vmatpush1.msra.mxu0 0.0
        %677 = vmatprep.subr.mxu0 0.0
        %678 = vmatpush1.msra.mxu0 0.0
        %679 = vmatprep.subr.mxu0 0.0
        %680 = vmatpush1.msra.mxu0 0.0
        %681 = vmatprep.subr.mxu0 0.0
        %682 = vmatpush1.msra.mxu0 0.0
        %683 = vmatprep.subr.mxu0 0.0
        %684 = vmatpush1.msra.mxu0 0.0
        %685 = vmatprep.subr.mxu0 0.0
        %686 = vmatpush1.msra.mxu0 0.0
        %687 = vmatprep.subr.mxu0 0.0
        %688 = vmatpush1.msra.mxu0 0.0
        %689 = vmatprep.subr.mxu0 0.0
        %690 = vmatpush1.msra.mxu0 0.0
        %691 = vmatprep.subr.mxu0 0.0
        %692 = vmatpush1.msra.mxu0 0.0
        %693 = vmatprep.subr.mxu0 0.0
        %694 = vmatpush1.msra.mxu0 0.0
        %695 = vmatprep.subr.mxu0 0.0
        %696 = vmatpush1.msra.mxu0 0.0
        %697 = vmatprep.subr.mxu0 0.0
        %698 = vmatpush1.msra.mxu0 %v653
        %699 = vmatprep.subr.mxu0 0.0
        %700 = vmatpush1.msra.mxu0 %v648
        %701 = vmatprep.subr.mxu0 0.0
        %702 = vmatpush1.msra.mxu0 %v643
        %703 = vmatprep.subr.mxu0 0.0
        %704 = vmatpush1.msra.mxu0 %v638
        %705 = vmatprep.subr.mxu0 0.0
        %706 = vmatpush2.msra.mxu0 0.0
        %707 = vmatprep.subr.mxu0 0.0
        %708 = vmatpush2.msra.mxu0 0.0
        %709 = vmatprep.subr.mxu0 0.0
        %710 = vmatpush2.msra.mxu0 0.0
        %711 = vmatprep.subr.mxu0 0.0
        %712 = vmatpush2.msra.mxu0 0.0
        %713 = vmatprep.subr.mxu0 0.0
        %714 = vmatpush2.msra.mxu0 0.0
        %715 = vmatprep.subr.mxu0 0.0
        %716 = vmatpush2.msra.mxu0 0.0
        %717 = vmatprep.subr.mxu0 0.0
        %718 = vmatpush2.msra.mxu0 0.0
        %719 = vmatprep.subr.mxu0 0.0
        %720 = vmatpush2.msra.mxu0 0.0
        %721 = vmatprep.subr.mxu0 0.0
        %722 = vmatpush2.msra.mxu0 0.0
        %723 = vmatprep.subr.mxu0 0.0
        %724 = vmatpush2.msra.mxu0 0.0
        %725 = vmatprep.subr.mxu0 0.0
        %726 = vmatpush2.msra.mxu0 0.0
        %727 = vmatprep.subr.mxu0 0.0
        %728 = vmatpush2.msra.mxu0 0.0
        %729 = vmatprep.subr.mxu0 0.0
        %730 = vmatpush2.msra.mxu0 0.0
        %731 = vmatprep.subr.mxu0 0.0
        %732 = vmatpush2.msra.mxu0 0.0
        %733 = vmatprep.subr.mxu0 0.0
        %734 = vmatpush2.msra.mxu0 0.0
        %735 = vmatprep.subr.mxu0 0.0
        %736 = vmatpush2.msra.mxu0 0.0
        %737 = vmatprep.mubr.f32.mxu0 0.0
        %738 = vmatmul.mubr.f32.gmra.mxu0 %v662
        %v739 = vpop.f32.mrf.mxu0
        %v740 = vadd.f32 0.0, %v739
        %v741 = vpop.f32.mrf.mxu0
        %742 = vmatprep.mubr.f32.mxu0 0.0
        %743 = vmatmul.mubr.f32.gmra.mxu0 %v665
        %v744 = vpop.f32.mrf.mxu0
        %v745 = vadd.f32 0.0, %v744
        %v746 = vpop.f32.mrf.mxu0
        %747 = vmatprep.mubr.f32.mxu0 0.0
        %748 = vmatmul.mubr.f32.gmra.mxu0 %v668
        %v749 = vpop.f32.mrf.mxu0
        %v750 = vadd.f32 0.0, %v749
        %v751 = vpop.f32.mrf.mxu0
        %752 = vmatprep.mubr.f32.mxu0 0.0
        %753 = vmatmul.mubr.f32.gmra.mxu0 %v671
        %v754 = vpop.f32.mrf.mxu0
        %v755 = vadd.f32 0.0, %v754
        %v756 = vpop.f32.mrf.mxu0
        %757 = vdwg.mxu0
        %v758 = vadd.f32 %v553, %v740
        %v759 = vadd.f32 %v558, %v745
        %v760 = vadd.f32 %v563, %v750
        %v761 = vadd.f32 %v568, %v755
        %s762 = scalar_lea.vmem [#allocation5], 32
        %v763 = vld [vmem:[%s762] sm:$0xff]
        %v764 = vld [vmem:[%s762 + $0x8] sm:$0xff]
        %v765 = vld [vmem:[%s762 + $0x10] sm:$0xff]
        %v766 = vld [vmem:[%s762 + $0x18] sm:$0xff]
        %v768 = vsel %vm274, %v763, 0
        %v771 = vsel %vm274, %v764, 0
        %v774 = vsel %vm274, %v765, 0
        %v777 = vsel %vm274, %v766, 0
        %779 = vmatprep.subr.mxu0 0.0
        %780 = vmatpush1.msra.mxu0 0.0
        %781 = vmatprep.subr.mxu0 0.0
        %782 = vmatpush1.msra.mxu0 0.0
        %783 = vmatprep.subr.mxu0 0.0
        %784 = vmatpush1.msra.mxu0 0.0
        %785 = vmatprep.subr.mxu0 0.0
        %786 = vmatpush1.msra.mxu0 0.0
        %787 = vmatprep.subr.mxu0 0.0
        %788 = vmatpush1.msra.mxu0 0.0
        %789 = vmatprep.subr.mxu0 0.0
        %790 = vmatpush1.msra.mxu0 0.0
        %791 = vmatprep.subr.mxu0 0.0
        %792 = vmatpush1.msra.mxu0 0.0
        %793 = vmatprep.subr.mxu0 0.0
        %794 = vmatpush1.msra.mxu0 0.0
        %795 = vmatprep.subr.mxu0 0.0
        %796 = vmatpush1.msra.mxu0 0.0
        %797 = vmatprep.subr.mxu0 0.0
        %798 = vmatpush1.msra.mxu0 0.0
        %799 = vmatprep.subr.mxu0 0.0
        %800 = vmatpush1.msra.mxu0 0.0
        %801 = vmatprep.subr.mxu0 0.0
        %802 = vmatpush1.msra.mxu0 0.0
        %803 = vmatprep.subr.mxu0 0.0
        %804 = vmatpush1.msra.mxu0 %v265
        %805 = vmatprep.subr.mxu0 0.0
        %806 = vmatpush1.msra.mxu0 %v264
        %807 = vmatprep.subr.mxu0 0.0
        %808 = vmatpush1.msra.mxu0 %v263
        %809 = vmatprep.subr.mxu0 0.0
        %810 = vmatpush1.msra.mxu0 %v262
        %811 = vmatprep.subr.mxu0 0.0
        %812 = vmatpush2.msra.mxu0 0.0
        %813 = vmatprep.subr.mxu0 0.0
        %814 = vmatpush2.msra.mxu0 0.0
        %815 = vmatprep.subr.mxu0 0.0
        %816 = vmatpush2.msra.mxu0 0.0
        %817 = vmatprep.subr.mxu0 0.0
        %818 = vmatpush2.msra.mxu0 0.0
        %819 = vmatprep.subr.mxu0 0.0
        %820 = vmatpush2.msra.mxu0 0.0
        %821 = vmatprep.subr.mxu0 0.0
        %822 = vmatpush2.msra.mxu0 0.0
        %823 = vmatprep.subr.mxu0 0.0
        %824 = vmatpush2.msra.mxu0 0.0
        %825 = vmatprep.subr.mxu0 0.0
        %826 = vmatpush2.msra.mxu0 0.0
        %827 = vmatprep.subr.mxu0 0.0
        %828 = vmatpush2.msra.mxu0 0.0
        %829 = vmatprep.subr.mxu0 0.0
        %830 = vmatpush2.msra.mxu0 0.0
        %831 = vmatprep.subr.mxu0 0.0
        %832 = vmatpush2.msra.mxu0 0.0
        %833 = vmatprep.subr.mxu0 0.0
        %834 = vmatpush2.msra.mxu0 0.0
        %835 = vmatprep.subr.mxu0 0.0
        %836 = vmatpush2.msra.mxu0 0.0
        %837 = vmatprep.subr.mxu0 0.0
        %838 = vmatpush2.msra.mxu0 0.0
        %839 = vmatprep.subr.mxu0 0.0
        %840 = vmatpush2.msra.mxu0 0.0
        %841 = vmatprep.subr.mxu0 0.0
        %842 = vmatpush2.msra.mxu0 0.0
        %843 = vmatprep.mubr.f32.mxu0 0.0
        %844 = vmatmul.mubr.f32.gmra.mxu0 %v768
        %v845 = vpop.f32.mrf.mxu0
        %v846 = vadd.f32 0.0, %v845
        %v847 = vpop.f32.mrf.mxu0
        %848 = vmatprep.mubr.f32.mxu0 0.0
        %849 = vmatmul.mubr.f32.gmra.mxu0 %v771
        %v850 = vpop.f32.mrf.mxu0
        %v851 = vadd.f32 0.0, %v850
        %v852 = vpop.f32.mrf.mxu0
        %853 = vmatprep.mubr.f32.mxu0 0.0
        %854 = vmatmul.mubr.f32.gmra.mxu0 %v774
        %v855 = vpop.f32.mrf.mxu0
        %v856 = vadd.f32 0.0, %v855
        %v857 = vpop.f32.mrf.mxu0
        %858 = vmatprep.mubr.f32.mxu0 0.0
        %859 = vmatmul.mubr.f32.gmra.mxu0 %v777
        %v860 = vpop.f32.mrf.mxu0
        %v861 = vadd.f32 0.0, %v860
        %v862 = vpop.f32.mrf.mxu0
        %863 = vdwg.mxu0
        %s864 = scalar_lea.vmem [#allocation7], 96
        %v865 = vld [vmem:[%s864] sm:$0xff]
        %v866 = vld [vmem:[%s864 + $0x8] sm:$0xff]
        %v867 = vld [vmem:[%s864 + $0x10] sm:$0xff]
        %v868 = vld [vmem:[%s864 + $0x18] sm:$0xff]
        %v870 = vsel %vm274, %v865, 0
        %v873 = vsel %vm274, %v866, 0
        %v876 = vsel %vm274, %v867, 0
        %v879 = vsel %vm274, %v868, 0
        %881 = vmatprep.subr.mxu0 0.0
        %882 = vmatpush1.msra.mxu0 0.0
        %883 = vmatprep.subr.mxu0 0.0
        %884 = vmatpush1.msra.mxu0 0.0
        %885 = vmatprep.subr.mxu0 0.0
        %886 = vmatpush1.msra.mxu0 0.0
        %887 = vmatprep.subr.mxu0 0.0
        %888 = vmatpush1.msra.mxu0 0.0
        %889 = vmatprep.subr.mxu0 0.0
        %890 = vmatpush1.msra.mxu0 0.0
        %891 = vmatprep.subr.mxu0 0.0
        %892 = vmatpush1.msra.mxu0 0.0
        %893 = vmatprep.subr.mxu0 0.0
        %894 = vmatpush1.msra.mxu0 0.0
        %895 = vmatprep.subr.mxu0 0.0
        %896 = vmatpush1.msra.mxu0 0.0
        %897 = vmatprep.subr.mxu0 0.0
        %898 = vmatpush1.msra.mxu0 0.0
        %899 = vmatprep.subr.mxu0 0.0
        %900 = vmatpush1.msra.mxu0 0.0
        %901 = vmatprep.subr.mxu0 0.0
        %902 = vmatpush1.msra.mxu0 0.0
        %903 = vmatprep.subr.mxu0 0.0
        %904 = vmatpush1.msra.mxu0 0.0
        %905 = vmatprep.subr.mxu0 0.0
        %906 = vmatpush1.msra.mxu0 %v861
        %907 = vmatprep.subr.mxu0 0.0
        %908 = vmatpush1.msra.mxu0 %v856
        %909 = vmatprep.subr.mxu0 0.0
        %910 = vmatpush1.msra.mxu0 %v851
        %911 = vmatprep.subr.mxu0 0.0
        %912 = vmatpush1.msra.mxu0 %v846
        %913 = vmatprep.subr.mxu0 0.0
        %914 = vmatpush2.msra.mxu0 0.0
        %915 = vmatprep.subr.mxu0 0.0
        %916 = vmatpush2.msra.mxu0 0.0
        %917 = vmatprep.subr.mxu0 0.0
        %918 = vmatpush2.msra.mxu0 0.0
        %919 = vmatprep.subr.mxu0 0.0
        %920 = vmatpush2.msra.mxu0 0.0
        %921 = vmatprep.subr.mxu0 0.0
        %922 = vmatpush2.msra.mxu0 0.0
        %923 = vmatprep.subr.mxu0 0.0
        %924 = vmatpush2.msra.mxu0 0.0
        %925 = vmatprep.subr.mxu0 0.0
        %926 = vmatpush2.msra.mxu0 0.0
        %927 = vmatprep.subr.mxu0 0.0
        %928 = vmatpush2.msra.mxu0 0.0
        %929 = vmatprep.subr.mxu0 0.0
        %930 = vmatpush2.msra.mxu0 0.0
        %931 = vmatprep.subr.mxu0 0.0
        %932 = vmatpush2.msra.mxu0 0.0
        %933 = vmatprep.subr.mxu0 0.0
        %934 = vmatpush2.msra.mxu0 0.0
        %935 = vmatprep.subr.mxu0 0.0
        %936 = vmatpush2.msra.mxu0 0.0
        %937 = vmatprep.subr.mxu0 0.0
        %938 = vmatpush2.msra.mxu0 0.0
        %939 = vmatprep.subr.mxu0 0.0
        %940 = vmatpush2.msra.mxu0 0.0
        %941 = vmatprep.subr.mxu0 0.0
        %942 = vmatpush2.msra.mxu0 0.0
        %943 = vmatprep.subr.mxu0 0.0
        %944 = vmatpush2.msra.mxu0 0.0
        %945 = vmatprep.mubr.f32.mxu0 0.0
        %946 = vmatmul.mubr.f32.gmra.mxu0 %v870
        %v947 = vpop.f32.mrf.mxu0
        %v948 = vadd.f32 0.0, %v947
        %v949 = vpop.f32.mrf.mxu0
        %950 = vmatprep.mubr.f32.mxu0 0.0
        %951 = vmatmul.mubr.f32.gmra.mxu0 %v873
        %v952 = vpop.f32.mrf.mxu0
        %v953 = vadd.f32 0.0, %v952
        %v954 = vpop.f32.mrf.mxu0
        %955 = vmatprep.mubr.f32.mxu0 0.0
        %956 = vmatmul.mubr.f32.gmra.mxu0 %v876
        %v957 = vpop.f32.mrf.mxu0
        %v958 = vadd.f32 0.0, %v957
        %v959 = vpop.f32.mrf.mxu0
        %960 = vmatprep.mubr.f32.mxu0 0.0
        %961 = vmatmul.mubr.f32.gmra.mxu0 %v879
        %v962 = vpop.f32.mrf.mxu0
        %v963 = vadd.f32 0.0, %v962
        %v964 = vpop.f32.mrf.mxu0
        %965 = vdwg.mxu0
        %v966 = vadd.f32 %v758, %v948
        %v967 = vadd.f32 %v759, %v953
        %v968 = vadd.f32 %v760, %v958
        %v969 = vadd.f32 %v761, %v963
        %970 = vmatprep.subr.mxu0 0.0
        %971 = vmatpush1.msra.mxu0 0.0
        %972 = vmatprep.subr.mxu0 0.0
        %973 = vmatpush1.msra.mxu0 0.0
        %974 = vmatprep.subr.mxu0 0.0
        %975 = vmatpush1.msra.mxu0 0.0
        %976 = vmatprep.subr.mxu0 0.0
        %977 = vmatpush1.msra.mxu0 0.0
        %978 = vmatprep.subr.mxu0 0.0
        %979 = vmatpush1.msra.mxu0 0.0
        %980 = vmatprep.subr.mxu0 0.0
        %981 = vmatpush1.msra.mxu0 0.0
        %982 = vmatprep.subr.mxu0 0.0
        %983 = vmatpush1.msra.mxu0 0.0
        %984 = vmatprep.subr.mxu0 0.0
        %985 = vmatpush1.msra.mxu0 0.0
        %986 = vmatprep.subr.mxu0 0.0
        %987 = vmatpush1.msra.mxu0 0.0
        %988 = vmatprep.subr.mxu0 0.0
        %989 = vmatpush1.msra.mxu0 0.0
        %990 = vmatprep.subr.mxu0 0.0
        %991 = vmatpush1.msra.mxu0 0.0
        %992 = vmatprep.subr.mxu0 0.0
        %993 = vmatpush1.msra.mxu0 0.0
        %994 = vmatprep.subr.mxu0 0.0
        %995 = vmatpush1.msra.mxu0 %v861
        %996 = vmatprep.subr.mxu0 0.0
        %997 = vmatpush1.msra.mxu0 %v856
        %998 = vmatprep.subr.mxu0 0.0
        %999 = vmatpush1.msra.mxu0 %v851
        %1000 = vmatprep.subr.mxu0 0.0
        %1001 = vmatpush1.msra.mxu0 %v846
        %1002 = vmatprep.subr.mxu0 0.0
        %1003 = vmatpush2.msra.mxu0 0.0
        %1004 = vmatprep.subr.mxu0 0.0
        %1005 = vmatpush2.msra.mxu0 0.0
        %1006 = vmatprep.subr.mxu0 0.0
        %1007 = vmatpush2.msra.mxu0 0.0
        %1008 = vmatprep.subr.mxu0 0.0
        %1009 = vmatpush2.msra.mxu0 0.0
        %1010 = vmatprep.subr.mxu0 0.0
        %1011 = vmatpush2.msra.mxu0 0.0
        %1012 = vmatprep.subr.mxu0 0.0
        %1013 = vmatpush2.msra.mxu0 0.0
        %1014 = vmatprep.subr.mxu0 0.0
        %1015 = vmatpush2.msra.mxu0 0.0
        %1016 = vmatprep.subr.mxu0 0.0
        %1017 = vmatpush2.msra.mxu0 0.0
        %1018 = vmatprep.subr.mxu0 0.0
        %1019 = vmatpush2.msra.mxu0 0.0
        %1020 = vmatprep.subr.mxu0 0.0
        %1021 = vmatpush2.msra.mxu0 0.0
        %1022 = vmatprep.subr.mxu0 0.0
        %1023 = vmatpush2.msra.mxu0 0.0
        %1024 = vmatprep.subr.mxu0 0.0
        %1025 = vmatpush2.msra.mxu0 0.0
        %1026 = vmatprep.subr.mxu0 0.0
        %1027 = vmatpush2.msra.mxu0 0.0
        %1028 = vmatprep.subr.mxu0 0.0
        %1029 = vmatpush2.msra.mxu0 0.0
        %1030 = vmatprep.subr.mxu0 0.0
        %1031 = vmatpush2.msra.mxu0 0.0
        %1032 = vmatprep.subr.mxu0 0.0
        %1033 = vmatpush2.msra.mxu0 0.0
        %1034 = vmatprep.mubr.f32.mxu0 0.0
        %1035 = vmatmul.mubr.f32.gmra.mxu0 %v768
        %v1036 = vpop.f32.mrf.mxu0
        %v1037 = vadd.f32 0.0, %v1036
        %v1038 = vpop.f32.mrf.mxu0
        %1039 = vmatprep.mubr.f32.mxu0 0.0
        %1040 = vmatmul.mubr.f32.gmra.mxu0 %v771
        %v1041 = vpop.f32.mrf.mxu0
        %v1042 = vadd.f32 0.0, %v1041
        %v1043 = vpop.f32.mrf.mxu0
        %1044 = vmatprep.mubr.f32.mxu0 0.0
        %1045 = vmatmul.mubr.f32.gmra.mxu0 %v774
        %v1046 = vpop.f32.mrf.mxu0
        %v1047 = vadd.f32 0.0, %v1046
        %v1048 = vpop.f32.mrf.mxu0
        %1049 = vmatprep.mubr.f32.mxu0 0.0
        %1050 = vmatmul.mubr.f32.gmra.mxu0 %v777
        %v1051 = vpop.f32.mrf.mxu0
        %v1052 = vadd.f32 0.0, %v1051
        %v1053 = vpop.f32.mrf.mxu0
        %1054 = vdwg.mxu0
        %s1055 = scalar_lea.vmem [#allocation7], 128
        %v1056 = vld [vmem:[%s1055] sm:$0xff]
        %v1057 = vld [vmem:[%s1055 + $0x8] sm:$0xff]
        %v1058 = vld [vmem:[%s1055 + $0x10] sm:$0xff]
        %v1059 = vld [vmem:[%s1055 + $0x18] sm:$0xff]
        %v1061 = vsel %vm274, %v1056, 0
        %v1064 = vsel %vm274, %v1057, 0
        %v1067 = vsel %vm274, %v1058, 0
        %v1070 = vsel %vm274, %v1059, 0
        %1072 = vmatprep.subr.mxu0 0.0
        %1073 = vmatpush1.msra.mxu0 0.0
        %1074 = vmatprep.subr.mxu0 0.0
        %1075 = vmatpush1.msra.mxu0 0.0
        %1076 = vmatprep.subr.mxu0 0.0
        %1077 = vmatpush1.msra.mxu0 0.0
        %1078 = vmatprep.subr.mxu0 0.0
        %1079 = vmatpush1.msra.mxu0 0.0
        %1080 = vmatprep.subr.mxu0 0.0
        %1081 = vmatpush1.msra.mxu0 0.0
        %1082 = vmatprep.subr.mxu0 0.0
        %1083 = vmatpush1.msra.mxu0 0.0
        %1084 = vmatprep.subr.mxu0 0.0
        %1085 = vmatpush1.msra.mxu0 0.0
        %1086 = vmatprep.subr.mxu0 0.0
        %1087 = vmatpush1.msra.mxu0 0.0
        %1088 = vmatprep.subr.mxu0 0.0
        %1089 = vmatpush1.msra.mxu0 0.0
        %1090 = vmatprep.subr.mxu0 0.0
        %1091 = vmatpush1.msra.mxu0 0.0
        %1092 = vmatprep.subr.mxu0 0.0
        %1093 = vmatpush1.msra.mxu0 0.0
        %1094 = vmatprep.subr.mxu0 0.0
        %1095 = vmatpush1.msra.mxu0 0.0
        %1096 = vmatprep.subr.mxu0 0.0
        %1097 = vmatpush1.msra.mxu0 %v1052
        %1098 = vmatprep.subr.mxu0 0.0
        %1099 = vmatpush1.msra.mxu0 %v1047
        %1100 = vmatprep.subr.mxu0 0.0
        %1101 = vmatpush1.msra.mxu0 %v1042
        %1102 = vmatprep.subr.mxu0 0.0
        %1103 = vmatpush1.msra.mxu0 %v1037
        %1104 = vmatprep.subr.mxu0 0.0
        %1105 = vmatpush2.msra.mxu0 0.0
        %1106 = vmatprep.subr.mxu0 0.0
        %1107 = vmatpush2.msra.mxu0 0.0
        %1108 = vmatprep.subr.mxu0 0.0
        %1109 = vmatpush2.msra.mxu0 0.0
        %1110 = vmatprep.subr.mxu0 0.0
        %1111 = vmatpush2.msra.mxu0 0.0
        %1112 = vmatprep.subr.mxu0 0.0
        %1113 = vmatpush2.msra.mxu0 0.0
        %1114 = vmatprep.subr.mxu0 0.0
        %1115 = vmatpush2.msra.mxu0 0.0
        %1116 = vmatprep.subr.mxu0 0.0
        %1117 = vmatpush2.msra.mxu0 0.0
        %1118 = vmatprep.subr.mxu0 0.0
        %1119 = vmatpush2.msra.mxu0 0.0
        %1120 = vmatprep.subr.mxu0 0.0
        %1121 = vmatpush2.msra.mxu0 0.0
        %1122 = vmatprep.subr.mxu0 0.0
        %1123 = vmatpush2.msra.mxu0 0.0
        %1124 = vmatprep.subr.mxu0 0.0
        %1125 = vmatpush2.msra.mxu0 0.0
        %1126 = vmatprep.subr.mxu0 0.0
        %1127 = vmatpush2.msra.mxu0 0.0
        %1128 = vmatprep.subr.mxu0 0.0
        %1129 = vmatpush2.msra.mxu0 0.0
        %1130 = vmatprep.subr.mxu0 0.0
        %1131 = vmatpush2.msra.mxu0 0.0
        %1132 = vmatprep.subr.mxu0 0.0
        %1133 = vmatpush2.msra.mxu0 0.0
        %1134 = vmatprep.subr.mxu0 0.0
        %1135 = vmatpush2.msra.mxu0 0.0
        %1136 = vmatprep.mubr.f32.mxu0 0.0
        %1137 = vmatmul.mubr.f32.gmra.mxu0 %v1061
        %v1138 = vpop.f32.mrf.mxu0
        %v1139 = vadd.f32 0.0, %v1138
        %v1140 = vpop.f32.mrf.mxu0
        %1141 = vmatprep.mubr.f32.mxu0 0.0
        %1142 = vmatmul.mubr.f32.gmra.mxu0 %v1064
        %v1143 = vpop.f32.mrf.mxu0
        %v1144 = vadd.f32 0.0, %v1143
        %v1145 = vpop.f32.mrf.mxu0
        %1146 = vmatprep.mubr.f32.mxu0 0.0
        %1147 = vmatmul.mubr.f32.gmra.mxu0 %v1067
        %v1148 = vpop.f32.mrf.mxu0
        %v1149 = vadd.f32 0.0, %v1148
        %v1150 = vpop.f32.mrf.mxu0
        %1151 = vmatprep.mubr.f32.mxu0 0.0
        %1152 = vmatmul.mubr.f32.gmra.mxu0 %v1070
        %v1153 = vpop.f32.mrf.mxu0
        %v1154 = vadd.f32 0.0, %v1153
        %v1155 = vpop.f32.mrf.mxu0
        %1156 = vdwg.mxu0
        %v1157 = vadd.f32 %v966, %v1139
        %v1158 = vadd.f32 %v967, %v1144
        %v1159 = vadd.f32 %v968, %v1149
        %v1160 = vadd.f32 %v969, %v1154
        %s1161 = scalar_lea.vmem [#allocation5], 64
        %v1162 = vld [vmem:[%s1161] sm:$0xff]
        %v1163 = vld [vmem:[%s1161 + $0x8] sm:$0xff]
        %v1164 = vld [vmem:[%s1161 + $0x10] sm:$0xff]
        %v1165 = vld [vmem:[%s1161 + $0x18] sm:$0xff]
        %v1167 = vsel %vm274, %v1162, 0
        %v1170 = vsel %vm274, %v1163, 0
        %v1173 = vsel %vm274, %v1164, 0
        %v1176 = vsel %vm274, %v1165, 0
        %1178 = vmatprep.subr.mxu0 0.0
        %1179 = vmatpush1.msra.mxu0 0.0
        %1180 = vmatprep.subr.mxu0 0.0
        %1181 = vmatpush1.msra.mxu0 0.0
        %1182 = vmatprep.subr.mxu0 0.0
        %1183 = vmatpush1.msra.mxu0 0.0
        %1184 = vmatprep.subr.mxu0 0.0
        %1185 = vmatpush1.msra.mxu0 0.0
        %1186 = vmatprep.subr.mxu0 0.0
        %1187 = vmatpush1.msra.mxu0 0.0
        %1188 = vmatprep.subr.mxu0 0.0
        %1189 = vmatpush1.msra.mxu0 0.0
        %1190 = vmatprep.subr.mxu0 0.0
        %1191 = vmatpush1.msra.mxu0 0.0
        %1192 = vmatprep.subr.mxu0 0.0
        %1193 = vmatpush1.msra.mxu0 0.0
        %1194 = vmatprep.subr.mxu0 0.0
        %1195 = vmatpush1.msra.mxu0 0.0
        %1196 = vmatprep.subr.mxu0 0.0
        %1197 = vmatpush1.msra.mxu0 0.0
        %1198 = vmatprep.subr.mxu0 0.0
        %1199 = vmatpush1.msra.mxu0 0.0
        %1200 = vmatprep.subr.mxu0 0.0
        %1201 = vmatpush1.msra.mxu0 0.0
        %1202 = vmatprep.subr.mxu0 0.0
        %1203 = vmatpush1.msra.mxu0 %v265
        %1204 = vmatprep.subr.mxu0 0.0
        %1205 = vmatpush1.msra.mxu0 %v264
        %1206 = vmatprep.subr.mxu0 0.0
        %1207 = vmatpush1.msra.mxu0 %v263
        %1208 = vmatprep.subr.mxu0 0.0
        %1209 = vmatpush1.msra.mxu0 %v262
        %1210 = vmatprep.subr.mxu0 0.0
        %1211 = vmatpush2.msra.mxu0 0.0
        %1212 = vmatprep.subr.mxu0 0.0
        %1213 = vmatpush2.msra.mxu0 0.0
        %1214 = vmatprep.subr.mxu0 0.0
        %1215 = vmatpush2.msra.mxu0 0.0
        %1216 = vmatprep.subr.mxu0 0.0
        %1217 = vmatpush2.msra.mxu0 0.0
        %1218 = vmatprep.subr.mxu0 0.0
        %1219 = vmatpush2.msra.mxu0 0.0
        %1220 = vmatprep.subr.mxu0 0.0
        %1221 = vmatpush2.msra.mxu0 0.0
        %1222 = vmatprep.subr.mxu0 0.0
        %1223 = vmatpush2.msra.mxu0 0.0
        %1224 = vmatprep.subr.mxu0 0.0
        %1225 = vmatpush2.msra.mxu0 0.0
        %1226 = vmatprep.subr.mxu0 0.0
        %1227 = vmatpush2.msra.mxu0 0.0
        %1228 = vmatprep.subr.mxu0 0.0
        %1229 = vmatpush2.msra.mxu0 0.0
        %1230 = vmatprep.subr.mxu0 0.0
        %1231 = vmatpush2.msra.mxu0 0.0
        %1232 = vmatprep.subr.mxu0 0.0
        %1233 = vmatpush2.msra.mxu0 0.0
        %1234 = vmatprep.subr.mxu0 0.0
        %1235 = vmatpush2.msra.mxu0 0.0
        %1236 = vmatprep.subr.mxu0 0.0
        %1237 = vmatpush2.msra.mxu0 0.0
        %1238 = vmatprep.subr.mxu0 0.0
        %1239 = vmatpush2.msra.mxu0 0.0
        %1240 = vmatprep.subr.mxu0 0.0
        %1241 = vmatpush2.msra.mxu0 0.0
        %1242 = vmatprep.mubr.f32.mxu0 0.0
        %1243 = vmatmul.mubr.f32.gmra.mxu0 %v1167
        %v1244 = vpop.f32.mrf.mxu0
        %v1245 = vadd.f32 0.0, %v1244
        %v1246 = vpop.f32.mrf.mxu0
        %1247 = vmatprep.mubr.f32.mxu0 0.0
        %1248 = vmatmul.mubr.f32.gmra.mxu0 %v1170
        %v1249 = vpop.f32.mrf.mxu0
        %v1250 = vadd.f32 0.0, %v1249
        %v1251 = vpop.f32.mrf.mxu0
        %1252 = vmatprep.mubr.f32.mxu0 0.0
        %1253 = vmatmul.mubr.f32.gmra.mxu0 %v1173
        %v1254 = vpop.f32.mrf.mxu0
        %v1255 = vadd.f32 0.0, %v1254
        %v1256 = vpop.f32.mrf.mxu0
        %1257 = vmatprep.mubr.f32.mxu0 0.0
        %1258 = vmatmul.mubr.f32.gmra.mxu0 %v1176
        %v1259 = vpop.f32.mrf.mxu0
        %v1260 = vadd.f32 0.0, %v1259
        %v1261 = vpop.f32.mrf.mxu0
        %1262 = vdwg.mxu0
        %s1263 = scalar_lea.vmem [#allocation7], 160
        %v1264 = vld [vmem:[%s1263] sm:$0xff]
        %v1265 = vld [vmem:[%s1263 + $0x8] sm:$0xff]
        %v1266 = vld [vmem:[%s1263 + $0x10] sm:$0xff]
        %v1267 = vld [vmem:[%s1263 + $0x18] sm:$0xff]
        %v1269 = vsel %vm274, %v1264, 0
        %v1272 = vsel %vm274, %v1265, 0
        %v1275 = vsel %vm274, %v1266, 0
        %v1278 = vsel %vm274, %v1267, 0
        %1280 = vmatprep.subr.mxu0 0.0
        %1281 = vmatpush1.msra.mxu0 0.0
        %1282 = vmatprep.subr.mxu0 0.0
        %1283 = vmatpush1.msra.mxu0 0.0
        %1284 = vmatprep.subr.mxu0 0.0
        %1285 = vmatpush1.msra.mxu0 0.0
        %1286 = vmatprep.subr.mxu0 0.0
        %1287 = vmatpush1.msra.mxu0 0.0
        %1288 = vmatprep.subr.mxu0 0.0
        %1289 = vmatpush1.msra.mxu0 0.0
        %1290 = vmatprep.subr.mxu0 0.0
        %1291 = vmatpush1.msra.mxu0 0.0
        %1292 = vmatprep.subr.mxu0 0.0
        %1293 = vmatpush1.msra.mxu0 0.0
        %1294 = vmatprep.subr.mxu0 0.0
        %1295 = vmatpush1.msra.mxu0 0.0
        %1296 = vmatprep.subr.mxu0 0.0
        %1297 = vmatpush1.msra.mxu0 0.0
        %1298 = vmatprep.subr.mxu0 0.0
        %1299 = vmatpush1.msra.mxu0 0.0
        %1300 = vmatprep.subr.mxu0 0.0
        %1301 = vmatpush1.msra.mxu0 0.0
        %1302 = vmatprep.subr.mxu0 0.0
        %1303 = vmatpush1.msra.mxu0 0.0
        %1304 = vmatprep.subr.mxu0 0.0
        %1305 = vmatpush1.msra.mxu0 %v1260
        %1306 = vmatprep.subr.mxu0 0.0
        %1307 = vmatpush1.msra.mxu0 %v1255
        %1308 = vmatprep.subr.mxu0 0.0
        %1309 = vmatpush1.msra.mxu0 %v1250
        %1310 = vmatprep.subr.mxu0 0.0
        %1311 = vmatpush1.msra.mxu0 %v1245
        %1312 = vmatprep.subr.mxu0 0.0
        %1313 = vmatpush2.msra.mxu0 0.0
        %1314 = vmatprep.subr.mxu0 0.0
        %1315 = vmatpush2.msra.mxu0 0.0
        %1316 = vmatprep.subr.mxu0 0.0
        %1317 = vmatpush2.msra.mxu0 0.0
        %1318 = vmatprep.subr.mxu0 0.0
        %1319 = vmatpush2.msra.mxu0 0.0
        %1320 = vmatprep.subr.mxu0 0.0
        %1321 = vmatpush2.msra.mxu0 0.0
        %1322 = vmatprep.subr.mxu0 0.0
        %1323 = vmatpush2.msra.mxu0 0.0
        %1324 = vmatprep.subr.mxu0 0.0
        %1325 = vmatpush2.msra.mxu0 0.0
        %1326 = vmatprep.subr.mxu0 0.0
        %1327 = vmatpush2.msra.mxu0 0.0
        %1328 = vmatprep.subr.mxu0 0.0
        %1329 = vmatpush2.msra.mxu0 0.0
        %1330 = vmatprep.subr.mxu0 0.0
        %1331 = vmatpush2.msra.mxu0 0.0
        %1332 = vmatprep.subr.mxu0 0.0
        %1333 = vmatpush2.msra.mxu0 0.0
        %1334 = vmatprep.subr.mxu0 0.0
        %1335 = vmatpush2.msra.mxu0 0.0
        %1336 = vmatprep.subr.mxu0 0.0
        %1337 = vmatpush2.msra.mxu0 0.0
        %1338 = vmatprep.subr.mxu0 0.0
        %1339 = vmatpush2.msra.mxu0 0.0
        %1340 = vmatprep.subr.mxu0 0.0
        %1341 = vmatpush2.msra.mxu0 0.0
        %1342 = vmatprep.subr.mxu0 0.0
        %1343 = vmatpush2.msra.mxu0 0.0
        %1344 = vmatprep.mubr.f32.mxu0 0.0
        %1345 = vmatmul.mubr.f32.gmra.mxu0 %v1269
        %v1346 = vpop.f32.mrf.mxu0
        %v1347 = vadd.f32 0.0, %v1346
        %v1348 = vpop.f32.mrf.mxu0
        %1349 = vmatprep.mubr.f32.mxu0 0.0
        %1350 = vmatmul.mubr.f32.gmra.mxu0 %v1272
        %v1351 = vpop.f32.mrf.mxu0
        %v1352 = vadd.f32 0.0, %v1351
        %v1353 = vpop.f32.mrf.mxu0
        %1354 = vmatprep.mubr.f32.mxu0 0.0
        %1355 = vmatmul.mubr.f32.gmra.mxu0 %v1275
        %v1356 = vpop.f32.mrf.mxu0
        %v1357 = vadd.f32 0.0, %v1356
        %v1358 = vpop.f32.mrf.mxu0
        %1359 = vmatprep.mubr.f32.mxu0 0.0
        %1360 = vmatmul.mubr.f32.gmra.mxu0 %v1278
        %v1361 = vpop.f32.mrf.mxu0
        %v1362 = vadd.f32 0.0, %v1361
        %v1363 = vpop.f32.mrf.mxu0
        %1364 = vdwg.mxu0
        %v1365 = vadd.f32 %v1157, %v1347
        %v1366 = vadd.f32 %v1158, %v1352
        %v1367 = vadd.f32 %v1159, %v1357
        %v1368 = vadd.f32 %v1160, %v1362
        %1369 = vmatprep.subr.mxu0 0.0
        %1370 = vmatpush1.msra.mxu0 0.0
        %1371 = vmatprep.subr.mxu0 0.0
        %1372 = vmatpush1.msra.mxu0 0.0
        %1373 = vmatprep.subr.mxu0 0.0
        %1374 = vmatpush1.msra.mxu0 0.0
        %1375 = vmatprep.subr.mxu0 0.0
        %1376 = vmatpush1.msra.mxu0 0.0
        %1377 = vmatprep.subr.mxu0 0.0
        %1378 = vmatpush1.msra.mxu0 0.0
        %1379 = vmatprep.subr.mxu0 0.0
        %1380 = vmatpush1.msra.mxu0 0.0
        %1381 = vmatprep.subr.mxu0 0.0
        %1382 = vmatpush1.msra.mxu0 0.0
        %1383 = vmatprep.subr.mxu0 0.0
        %1384 = vmatpush1.msra.mxu0 0.0
        %1385 = vmatprep.subr.mxu0 0.0
        %1386 = vmatpush1.msra.mxu0 0.0
        %1387 = vmatprep.subr.mxu0 0.0
        %1388 = vmatpush1.msra.mxu0 0.0
        %1389 = vmatprep.subr.mxu0 0.0
        %1390 = vmatpush1.msra.mxu0 0.0
        %1391 = vmatprep.subr.mxu0 0.0
        %1392 = vmatpush1.msra.mxu0 0.0
        %1393 = vmatprep.subr.mxu0 0.0
        %1394 = vmatpush1.msra.mxu0 %v1260
        %1395 = vmatprep.subr.mxu0 0.0
        %1396 = vmatpush1.msra.mxu0 %v1255
        %1397 = vmatprep.subr.mxu0 0.0
        %1398 = vmatpush1.msra.mxu0 %v1250
        %1399 = vmatprep.subr.mxu0 0.0
        %1400 = vmatpush1.msra.mxu0 %v1245
        %1401 = vmatprep.subr.mxu0 0.0
        %1402 = vmatpush2.msra.mxu0 0.0
        %1403 = vmatprep.subr.mxu0 0.0
        %1404 = vmatpush2.msra.mxu0 0.0
        %1405 = vmatprep.subr.mxu0 0.0
        %1406 = vmatpush2.msra.mxu0 0.0
        %1407 = vmatprep.subr.mxu0 0.0
        %1408 = vmatpush2.msra.mxu0 0.0
        %1409 = vmatprep.subr.mxu0 0.0
        %1410 = vmatpush2.msra.mxu0 0.0
        %1411 = vmatprep.subr.mxu0 0.0
        %1412 = vmatpush2.msra.mxu0 0.0
        %1413 = vmatprep.subr.mxu0 0.0
        %1414 = vmatpush2.msra.mxu0 0.0
        %1415 = vmatprep.subr.mxu0 0.0
        %1416 = vmatpush2.msra.mxu0 0.0
        %1417 = vmatprep.subr.mxu0 0.0
        %1418 = vmatpush2.msra.mxu0 0.0
        %1419 = vmatprep.subr.mxu0 0.0
        %1420 = vmatpush2.msra.mxu0 0.0
        %1421 = vmatprep.subr.mxu0 0.0
        %1422 = vmatpush2.msra.mxu0 0.0
        %1423 = vmatprep.subr.mxu0 0.0
        %1424 = vmatpush2.msra.mxu0 0.0
        %1425 = vmatprep.subr.mxu0 0.0
        %1426 = vmatpush2.msra.mxu0 0.0
        %1427 = vmatprep.subr.mxu0 0.0
        %1428 = vmatpush2.msra.mxu0 0.0
        %1429 = vmatprep.subr.mxu0 0.0
        %1430 = vmatpush2.msra.mxu0 0.0
        %1431 = vmatprep.subr.mxu0 0.0
        %1432 = vmatpush2.msra.mxu0 0.0
        %1433 = vmatprep.mubr.f32.mxu0 0.0
        %1434 = vmatmul.mubr.f32.gmra.mxu0 %v1167
        %v1435 = vpop.f32.mrf.mxu0
        %v1436 = vadd.f32 0.0, %v1435
        %v1437 = vpop.f32.mrf.mxu0
        %1438 = vmatprep.mubr.f32.mxu0 0.0
        %1439 = vmatmul.mubr.f32.gmra.mxu0 %v1170
        %v1440 = vpop.f32.mrf.mxu0
        %v1441 = vadd.f32 0.0, %v1440
        %v1442 = vpop.f32.mrf.mxu0
        %1443 = vmatprep.mubr.f32.mxu0 0.0
        %1444 = vmatmul.mubr.f32.gmra.mxu0 %v1173
        %v1445 = vpop.f32.mrf.mxu0
        %v1446 = vadd.f32 0.0, %v1445
        %v1447 = vpop.f32.mrf.mxu0
        %1448 = vmatprep.mubr.f32.mxu0 0.0
        %1449 = vmatmul.mubr.f32.gmra.mxu0 %v1176
        %v1450 = vpop.f32.mrf.mxu0
        %v1451 = vadd.f32 0.0, %v1450
        %v1452 = vpop.f32.mrf.mxu0
        %1453 = vdwg.mxu0
        %s1454 = scalar_lea.vmem [#allocation7], 192
        %v1455 = vld [vmem:[%s1454] sm:$0xff]
        %v1456 = vld [vmem:[%s1454 + $0x8] sm:$0xff]
        %v1457 = vld [vmem:[%s1454 + $0x10] sm:$0xff]
        %v1458 = vld [vmem:[%s1454 + $0x18] sm:$0xff]
        %v1460 = vsel %vm274, %v1455, 0
        %v1463 = vsel %vm274, %v1456, 0
        %v1466 = vsel %vm274, %v1457, 0
        %v1469 = vsel %vm274, %v1458, 0
        %1471 = vmatprep.subr.mxu0 0.0
        %1472 = vmatpush1.msra.mxu0 0.0
        %1473 = vmatprep.subr.mxu0 0.0
        %1474 = vmatpush1.msra.mxu0 0.0
        %1475 = vmatprep.subr.mxu0 0.0
        %1476 = vmatpush1.msra.mxu0 0.0
        %1477 = vmatprep.subr.mxu0 0.0
        %1478 = vmatpush1.msra.mxu0 0.0
        %1479 = vmatprep.subr.mxu0 0.0
        %1480 = vmatpush1.msra.mxu0 0.0
        %1481 = vmatprep.subr.mxu0 0.0
        %1482 = vmatpush1.msra.mxu0 0.0
        %1483 = vmatprep.subr.mxu0 0.0
        %1484 = vmatpush1.msra.mxu0 0.0
        %1485 = vmatprep.subr.mxu0 0.0
        %1486 = vmatpush1.msra.mxu0 0.0
        %1487 = vmatprep.subr.mxu0 0.0
        %1488 = vmatpush1.msra.mxu0 0.0
        %1489 = vmatprep.subr.mxu0 0.0
        %1490 = vmatpush1.msra.mxu0 0.0
        %1491 = vmatprep.subr.mxu0 0.0
        %1492 = vmatpush1.msra.mxu0 0.0
        %1493 = vmatprep.subr.mxu0 0.0
        %1494 = vmatpush1.msra.mxu0 0.0
        %1495 = vmatprep.subr.mxu0 0.0
        %1496 = vmatpush1.msra.mxu0 %v1451
        %1497 = vmatprep.subr.mxu0 0.0
        %1498 = vmatpush1.msra.mxu0 %v1446
        %1499 = vmatprep.subr.mxu0 0.0
        %1500 = vmatpush1.msra.mxu0 %v1441
        %1501 = vmatprep.subr.mxu0 0.0
        %1502 = vmatpush1.msra.mxu0 %v1436
        %1503 = vmatprep.subr.mxu0 0.0
        %1504 = vmatpush2.msra.mxu0 0.0
        %1505 = vmatprep.subr.mxu0 0.0
        %1506 = vmatpush2.msra.mxu0 0.0
        %1507 = vmatprep.subr.mxu0 0.0
        %1508 = vmatpush2.msra.mxu0 0.0
        %1509 = vmatprep.subr.mxu0 0.0
        %1510 = vmatpush2.msra.mxu0 0.0
        %1511 = vmatprep.subr.mxu0 0.0
        %1512 = vmatpush2.msra.mxu0 0.0
        %1513 = vmatprep.subr.mxu0 0.0
        %1514 = vmatpush2.msra.mxu0 0.0
        %1515 = vmatprep.subr.mxu0 0.0
        %1516 = vmatpush2.msra.mxu0 0.0
        %1517 = vmatprep.subr.mxu0 0.0
        %1518 = vmatpush2.msra.mxu0 0.0
        %1519 = vmatprep.subr.mxu0 0.0
        %1520 = vmatpush2.msra.mxu0 0.0
        %1521 = vmatprep.subr.mxu0 0.0
        %1522 = vmatpush2.msra.mxu0 0.0
        %1523 = vmatprep.subr.mxu0 0.0
        %1524 = vmatpush2.msra.mxu0 0.0
        %1525 = vmatprep.subr.mxu0 0.0
        %1526 = vmatpush2.msra.mxu0 0.0
        %1527 = vmatprep.subr.mxu0 0.0
        %1528 = vmatpush2.msra.mxu0 0.0
        %1529 = vmatprep.subr.mxu0 0.0
        %1530 = vmatpush2.msra.mxu0 0.0
        %1531 = vmatprep.subr.mxu0 0.0
        %1532 = vmatpush2.msra.mxu0 0.0
        %1533 = vmatprep.subr.mxu0 0.0
        %1534 = vmatpush2.msra.mxu0 0.0
        %1535 = vmatprep.mubr.f32.mxu0 0.0
        %1536 = vmatmul.mubr.f32.gmra.mxu0 %v1460
        %v1537 = vpop.f32.mrf.mxu0
        %v1538 = vadd.f32 0.0, %v1537
        %v1539 = vpop.f32.mrf.mxu0
        %1540 = vmatprep.mubr.f32.mxu0 0.0
        %1541 = vmatmul.mubr.f32.gmra.mxu0 %v1463
        %v1542 = vpop.f32.mrf.mxu0
        %v1543 = vadd.f32 0.0, %v1542
        %v1544 = vpop.f32.mrf.mxu0
        %1545 = vmatprep.mubr.f32.mxu0 0.0
        %1546 = vmatmul.mubr.f32.gmra.mxu0 %v1466
        %v1547 = vpop.f32.mrf.mxu0
        %v1548 = vadd.f32 0.0, %v1547
        %v1549 = vpop.f32.mrf.mxu0
        %1550 = vmatprep.mubr.f32.mxu0 0.0
        %1551 = vmatmul.mubr.f32.gmra.mxu0 %v1469
        %v1552 = vpop.f32.mrf.mxu0
        %v1553 = vadd.f32 0.0, %v1552
        %v1554 = vpop.f32.mrf.mxu0
        %1555 = vdwg.mxu0
        %v1556 = vadd.f32 %v1365, %v1538
        %v1557 = vadd.f32 %v1366, %v1543
        %v1558 = vadd.f32 %v1367, %v1548
        %v1559 = vadd.f32 %v1368, %v1553
        %v1560 = vld [vmem:[%s3] sm:$0xff]
        %v1561 = vld [vmem:[%s3 + $0x8] sm:$0xff]
        %v1562 = vld [vmem:[%s3 + $0x10] sm:$0xff]
        %v1563 = vld [vmem:[%s3 + $0x18] sm:$0xff]
        %1565 = vset.pattern.permute.xlu0 0
        %1566 = vperm.xlu0 %1565, %v1560
        %v1567 = vpop.permute.xlu0 %1566
        %1570 = vset.pattern.permute.xlu0 0
        %1571 = vperm.xlu0 %1570, %v1561
        %v1572 = vpop.permute.xlu0 %1571
        %1575 = vset.pattern.permute.xlu0 0
        %1576 = vperm.xlu0 %1575, %v1562
        %v1577 = vpop.permute.xlu0 %1576
        %1580 = vset.pattern.permute.xlu0 0
        %1581 = vperm.xlu0 %1580, %v1563
        %v1582 = vpop.permute.xlu0 %1581
        %v1584 = vadd.f32 %v1556, %v1567
        %v1585 = vadd.f32 %v1557, %v1572
        %v1586 = vadd.f32 %v1558, %v1577
        %v1587 = vadd.f32 %v1559, %v1582
        %1588 = vst [vmem:[%s261] sm:$0xff] %v1584
        %1589 = vst [vmem:[%s261 + $0x8] sm:$0xff] %v1585
        %1590 = vst [vmem:[%s261 + $0x10] sm:$0xff] %v1586
        %1591 = vst [vmem:[%s261 + $0x18] sm:$0xff] %v1587
        %s1592 = sand.u32 %s135, 1
        %s1593 = scalar_lea.sflag [#allocation4], %s1592
        %s1594 = sand.u32 %s135, 1
        %s1595 = smul.addr %s1594, 32
        %s1596 = scalar_lea.vmem [#allocation8], %s1595
        // Predicated region
        $region49: #{tpu_custom_call.1} parent=35 // pred_check
          %p1597 = pneg %p145
        $region50: #{tpu_custom_call.1} parent=35 // pred_check_branch
          %1599 = sbr.rel (%p1597) target = $region52
        $region51: #{tpu_custom_call.1} parent=35 // pred_region
          %s1601 = ssub.s32 512, 512
          %1602 = vsyncadd %s1593, %s1601
          %s1603 = smul.addr %s26, 4
          %s1604 = sadd.s32 %s27, %s1603
          %s1605 = smul.addr %s1604, 128
          %s1606 = scalar_lea.hbm %s4, %s1605
          %s1607 = sshll.u32 %s1596, 4
          %s1608 = int_to_ptr.vmem [resolvable:$true] %s1607
          %1613 = dma.vmem_to_hbm [thread:$0]  %s1608, 512, %s1606, %s1593, 128, 128, 8
        $region52: #{tpu_custom_call.1} parent=35 // pred_fallthru
          _
      $region36: #{tpu_custom_call.1} parent=5 // pred_fallthru
        _
      %p1614 = scmp.le.s32.totalorder 2, %s17
      // Predicated region
      $region53: #{tpu_custom_call.1} parent=5 // pred_check
        %p1615 = pneg %p1614
      $region54: #{tpu_custom_call.1} parent=5 // pred_check_branch
        %1617 = sbr.rel (%p1615) target = $region56
      $region55: #{tpu_custom_call.1} parent=5 // pred_region
        %s1618 = ssub.s32 %s17, 2
        // Predicated region
        $region57: #{tpu_custom_call.1} parent=55 // pred_check
          %p1619 = pneg %p151
        $region58: #{tpu_custom_call.1} parent=55 // pred_check_branch
          %1621 = sbr.rel (%p1619) target = $region60
        $region59: #{tpu_custom_call.1} parent=55 // pred_region
          %s1622 = sand.u32 %s136, 1
          %s1623 = scalar_lea.sflag [#allocation4], %s1622
          %s1624 = sand.u32 %s136, 1
          %s1625 = smul.addr %s1624, 32
          %s1626 = scalar_lea.vmem [#allocation8], %s1625
          %1627 = dma.done %s1623, 512
        $region60: #{tpu_custom_call.1} parent=55 // pred_fallthru
          _
      $region56: #{tpu_custom_call.1} parent=5 // pred_fallthru
        _
    $region6: #{tpu_custom_call.1} parent=1 // loop_footer
      %s21 = sadd.s32 1, %s17
    $region7: #{tpu_custom_call.1} parent=1 // loop_footer_branch
      %16 = sbr.rel target = $region3
    $region8: #{tpu_custom_call.1} parent=1 // loop_exit
      _
    %1628 = vsyncpa [#allocation3], 1
    %s1629 = scalar_lea.sflag [#allocation3], 1
    %1630 = vsyncpa %s1629, 1
    %1631 = vsyncpa [#allocation6], 1
    %1632 = vsyncpa [#allocation4], 1
    %s1633 = scalar_lea.sflag [#allocation4], 1
    %1634 = vsyncpa %s1633, 1

</llo_original>
